<compile_context>
chip_gen: v6e
topology: v6e:2x2x1
jax: 0.10.0
libtpu: 0.0.40
codegen_flags: <defaults>
</compile_context>

<pallas_src>
import functools

import jax
import jax.numpy as jnp
import numpy as np
from jax.experimental import pallas as pl
from jax.experimental.pallas import tpu as pltpu

LN_EPS = 1e-5


def _assa_kernel(w_ref,        # SMEM (2,)     : [softmax(w1), softmax(w2)]
                 x_ref,        # VMEM (C, N)   : one batch element, channel-major
                 gamma_ref,    # VMEM (C, 1)
                 beta_ref,     # VMEM (C, 1)
                 wqkv_ref,     # VMEM (3C, C)  : [Wq; Wk; Wv] (channel-major)
                 out_ref,      # VMEM (C, N)
                 *, C, N, matmul_dtype):
    x = x_ref[...]                                            # (C, N) f32

    # LayerNorm over the channel (sublane) axis -- all 128 lanes stay busy,
    # no transpose needed anywhere.
    mean = jnp.mean(x, axis=0, keepdims=True)                 # (1, N)
    var = jnp.mean((x - mean) ** 2, axis=0, keepdims=True)    # (1, N)
    xn = (x - mean) * jax.lax.rsqrt(var + LN_EPS)
    xn = xn * gamma_ref[...] + beta_ref[...]                  # (C, N) f32

    # Fused channel-major Q/K/V projection: (3C, C) @ (C, N) -> (3C, N).
    # One MXU pass, f32 accumulation; result rows are sublane-aligned slices.
    qkv = jnp.dot(wqkv_ref[...], xn.astype(matmul_dtype),
                  preferred_element_type=jnp.float32)         # (3C, N) f32
    q = qkv[:C].astype(matmul_dtype)                          # (C, N)
    k = qkv[C:2 * C].astype(matmul_dtype)                     # (C, N)
    v = qkv[2 * C:].astype(matmul_dtype)                      # (C, N)

    # Scores s[n, m] = sum_c q[c, n] * k[c, m]  (no 1/sqrt(d) scale, per the
    # PyTorch module).  Contraction over the sublane axis of both operands.
    s = jax.lax.dot_general(q, k, (((0,), (0,)), ((), ())),
                            preferred_element_type=jnp.float32)   # (N, N) f32

    # Fused two-branch attention: softmax branch + relu^2 branch, built from a
    # single score buffer; w1/w2 folded into the per-row / per-tile factors.
    m = jnp.max(s, axis=-1, keepdims=True)                    # (N, 1)
    e = jnp.exp(s - m)
    l = jnp.sum(e, axis=-1, keepdims=True)
    inv_l = pl.reciprocal(l, approx=True)       # EUP slot (off the VALU path)
    inv_l = inv_l * (2.0 - l * inv_l)           # one Newton step (l >= 1 here)
    r = jnp.maximum(s, 0.0)
    attn = e * (w_ref[0] * inv_l) + r * (w_ref[1] * r)        # (N, N) f32

    # Output natively in channel-major form: y[c, n] = sum_m v[c, m] attn[n, m]
    # -> (C, N).  Lane-dense result, no final transpose, unmasked stores.
    y = jax.lax.dot_general(v, attn.astype(matmul_dtype),
                            (((1,), (1,)), ((), ())),
                            preferred_element_type=jnp.float32)   # (C, N) f32

    # Residual is the LayerNorm'd tokens (already channel-major).
    out_ref[...] = (y + xn).astype(out_ref.dtype)


def prepare_assa_params(params, matmul_dtype=jnp.bfloat16):
    """One-time parameter prep (cache the result; don't redo per forward)."""
    C = params["gamma"].shape[0]
    e1 = jnp.exp(params["w1"])
    e2 = jnp.exp(params["w2"])
    w_vec = (jnp.concatenate([e1, e2]) / (e1 + e2)).astype(jnp.float32)  # (2,)
    gamma = params["gamma"].reshape(C, 1).astype(jnp.float32)
    beta = params["beta"].reshape(C, 1).astype(jnp.float32)
    # Channel-major projection weight: Q_cn = Wq @ x_cn, so just stack the
    # PyTorch (out, in) weights along rows -- no transpose needed.
    wqkv = jnp.concatenate(
        [params["wq"], params["wk"], params["wv"]], axis=0
    ).astype(matmul_dtype)                                               # (3C, C)
    return {"w": w_vec, "gamma": gamma, "beta": beta, "wqkv": wqkv}


def assa_forward(x_nchw, prepared, matmul_dtype=jnp.bfloat16):
    """Pallas ASSA forward.  x_nchw: (B, C, H, W) float32."""
    B, C, H, W = x_nchw.shape
    N = H * W

    # Pure metadata reshape -- no HBM transpose pass in the wrapper.
    x_bcn = x_nchw.reshape(B, C, N).astype(jnp.float32)

    kernel = functools.partial(_assa_kernel, C=C, N=N, matmul_dtype=matmul_dtype)

    cost = pl.CostEstimate(
        flops=2 * B * N * 3 * C * C + 4 * B * N * N * C,
        transcendentals=B * N * N + B * N,
        bytes_accessed=4 * (2 * B * C * N + 3 * C * C + 2 * C + 2),
    )

    out_bcn = pl.pallas_call(
        kernel,
        grid=(B,),
        out_shape=jax.ShapeDtypeStruct((B, C, N), jnp.float32),
        in_specs=[
            pl.BlockSpec(memory_space=pltpu.MemorySpace.SMEM),       # w_vec (2,)
            pl.BlockSpec((None, C, N), lambda b: (b, 0, 0)),         # x (B,C,N)
            pl.BlockSpec((C, 1), lambda b: (0, 0)),                  # gamma
            pl.BlockSpec((C, 1), lambda b: (0, 0)),                  # beta
            pl.BlockSpec((3 * C, C), lambda b: (0, 0)),              # Wqkv
        ],
        out_specs=pl.BlockSpec((None, C, N), lambda b: (b, 0, 0)),
        compiler_params=pltpu.CompilerParams(
            dimension_semantics=("parallel",)),                      # v7x: 2 TCs
        cost_estimate=cost,
    )(prepared["w"], x_bcn, prepared["gamma"], prepared["beta"], prepared["wqkv"])

    # Free reshape back to NCHW (output is already channel-major).
    return out_bcn.reshape(B, C, H, W)


def assa_reference(x_nchw, params):
    """Pure-JAX f32 reference matching the PyTorch module semantics."""
    B, C, H, W = x_nchw.shape
    N = H * W
    hp = jax.lax.Precision.HIGHEST
    x = jnp.transpose(x_nchw.reshape(B, C, N), (0, 2, 1))             # (B, N, C)
    mean = jnp.mean(x, axis=-1, keepdims=True)
    var = jnp.mean((x - mean) ** 2, axis=-1, keepdims=True)
    xn = (x - mean) / jnp.sqrt(var + LN_EPS) * params["gamma"] + params["beta"]
    Q = jnp.einsum("bnc,oc->bno", xn, params["wq"], precision=hp)
    K = jnp.einsum("bnc,oc->bno", xn, params["wk"], precision=hp)
    V = jnp.einsum("bnc,oc->bno", xn, params["wv"], precision=hp)
    s = jnp.einsum("bnc,bmc->bnm", Q, K, precision=hp)
    attn1 = jax.nn.softmax(s, axis=-1)
    attn2 = jnp.maximum(s, 0.0) ** 2
    e1, e2 = jnp.exp(params["w1"]), jnp.exp(params["w2"])
    w1 = e1 / (e1 + e2)
    w2 = e2 / (e1 + e2)
    attn = w1 * attn1 + w2 * attn2
    out = jnp.einsum("bnm,bmc->bnc", attn, V, precision=hp)           # (B, N, C)
    out = jnp.transpose(out, (0, 2, 1)).reshape(B, C, H, W)
    res = jnp.transpose(xn, (0, 2, 1)).reshape(B, C, H, W)
    return out + res


def init_params(key, dim):
    k1, k2, k3 = jax.random.split(key, 3)
    scale = 1.0 / np.sqrt(dim)
    return {
        "gamma": jnp.ones((dim,), jnp.float32),          # nn.LayerNorm init
        "beta": jnp.zeros((dim,), jnp.float32),
        "wq": jax.random.uniform(k1, (dim, dim), jnp.float32, -scale, scale),
        "wk": jax.random.uniform(k2, (dim, dim), jnp.float32, -scale, scale),
        "wv": jax.random.uniform(k3, (dim, dim), jnp.float32, -scale, scale),
        "w1": jnp.ones((1,), jnp.float32),               # nn.Parameter(torch.ones(1))
        "w2": jnp.ones((1,), jnp.float32),
    }


if __name__ == "__main__":
    # dim = C = 32, N = H*W = 256 (multiple of 128 -> lane-dense tiles/stores).
    B, C, H, W = 2, 32, 16, 16
    key = jax.random.PRNGKey(0)
    kx, kp = jax.random.split(key)
    x = jax.random.normal(kx, (B, C, H, W), jnp.float32)
    params = init_params(kp, C)

    ref = np.asarray(assa_reference(x, params))

    # 1) Exact-semantics check with f32 MXU operands (matches module math).
    prep_f32 = prepare_assa_params(params, matmul_dtype=jnp.float32)
    out_f32 = jax.block_until_ready(
        assa_forward(x, prep_f32, matmul_dtype=jnp.float32))
    np.testing.assert_allclose(np.asarray(out_f32), ref, rtol=1e-3, atol=1e-3)

    # 2) Performance path: bf16 MXU operands with f32 accumulation.  bf16
    #    rounding of the matmul inputs (incl. the un-normalized relu^2 branch)
    #    gives ~0.5% relative error, so check relative L2 error.
    prep_bf16 = prepare_assa_params(params, matmul_dtype=jnp.bfloat16)
    out_bf16 = jax.block_until_ready(
        assa_forward(x, prep_bf16, matmul_dtype=jnp.bfloat16))
    rel = (np.linalg.norm(np.asarray(out_bf16) - ref) /
           np.linalg.norm(ref))
    assert rel < 3e-2, f"bf16 path relative L2 error too high: {rel}"

    print("KERNEL_OK")
</pallas_src>

<mosaic_0001>
module attributes {stable_mosaic.version = 11 : i64} {
  func.func @_assa_kernel(%arg0: i32, %arg1: memref<2xf32, #tpu.memory_space<smem>>, %arg2: memref<1x32x256xf32, #tpu.memory_space<vmem>>, %arg3: memref<32x1xf32, #tpu.memory_space<vmem>>, %arg4: memref<32x1xf32, #tpu.memory_space<vmem>>, %arg5: memref<96x32xf32, #tpu.memory_space<vmem>>, %arg6: memref<1x32x256xf32, #tpu.memory_space<vmem>>) attributes {dimension_semantics = [#tpu.dimension_semantics<parallel>], iteration_bounds = array<i64: 2>, scalar_prefetch = 0 : i64, scratch_operands = 0 : i64, tpu.core_type = #tpu.core_type<tc>, window_params = [{transform_indices = @transform_0, window_bounds = array<i64: 2>}, {transform_indices = @transform_1, window_bounds = array<i64: 1, 32, 256>}, {pipeline_mode = #tpu.pipeline_mode<synchronous>, transform_indices = @transform_2, window_bounds = array<i64: 32, 1>}, {pipeline_mode = #tpu.pipeline_mode<synchronous>, transform_indices = @transform_3, window_bounds = array<i64: 32, 1>}, {pipeline_mode = #tpu.pipeline_mode<synchronous>, transform_indices = @transform_4, window_bounds = array<i64: 96, 32>}, {transform_indices = @transform_5, window_bounds = array<i64: 1, 32, 256>}]} {
    %c0 = arith.constant 0 : index
    %c0_0 = arith.constant 0 : index
    %c0_1 = arith.constant 0 : index
    %0 = vector.load %arg2[%c0, %c0_0, %c0_1] : memref<1x32x256xf32, #tpu.memory_space<vmem>>, vector<1x32x256xf32>
    %1 = vector.shape_cast %0 : vector<1x32x256xf32> to vector<32x256xf32>
    %cst = arith.constant dense<0.000000e+00> : vector<256xf32>
    %2 = vector.multi_reduction <add>, %1, %cst [0] : vector<32x256xf32> to vector<256xf32>
    %3 = vector.shape_cast %2 : vector<256xf32> to vector<1x256xf32>
    %cst_2 = arith.constant 3.200000e+01 : f32
    %4 = vector.broadcast %cst_2 : f32 to vector<1x256xf32>
    %5 = arith.divf %3, %4 : vector<1x256xf32>
    %6 = vector.broadcast %5 : vector<1x256xf32> to vector<32x256xf32>
    %7 = arith.subf %1, %6 : vector<32x256xf32>
    %8 = arith.mulf %7, %7 : vector<32x256xf32>
    %cst_3 = arith.constant dense<0.000000e+00> : vector<256xf32>
    %9 = vector.multi_reduction <add>, %8, %cst_3 [0] : vector<32x256xf32> to vector<256xf32>
    %10 = vector.shape_cast %9 : vector<256xf32> to vector<1x256xf32>
    %cst_4 = arith.constant 3.200000e+01 : f32
    %11 = vector.broadcast %cst_4 : f32 to vector<1x256xf32>
    %12 = arith.divf %10, %11 : vector<1x256xf32>
    %13 = vector.broadcast %5 : vector<1x256xf32> to vector<32x256xf32>
    %14 = arith.subf %1, %13 : vector<32x256xf32>
    %cst_5 = arith.constant 9.99999974E-6 : f32
    %15 = vector.broadcast %cst_5 : f32 to vector<1x256xf32>
    %16 = arith.addf %12, %15 : vector<1x256xf32>
    %17 = math.rsqrt %16 : vector<1x256xf32>
    %18 = vector.broadcast %17 : vector<1x256xf32> to vector<32x256xf32>
    %19 = arith.mulf %14, %18 : vector<32x256xf32>
    %c0_6 = arith.constant 0 : index
    %c0_7 = arith.constant 0 : index
    %20 = vector.load %arg3[%c0_6, %c0_7] : memref<32x1xf32, #tpu.memory_space<vmem>>, vector<32x1xf32>
    %21 = vector.broadcast %20 : vector<32x1xf32> to vector<32x256xf32>
    %22 = arith.mulf %19, %21 : vector<32x256xf32>
    %c0_8 = arith.constant 0 : index
    %c0_9 = arith.constant 0 : index
    %23 = vector.load %arg4[%c0_8, %c0_9] : memref<32x1xf32, #tpu.memory_space<vmem>>, vector<32x1xf32>
    %24 = vector.broadcast %23 : vector<32x1xf32> to vector<32x256xf32>
    %25 = arith.addf %22, %24 : vector<32x256xf32>
    %c0_10 = arith.constant 0 : index
    %c0_11 = arith.constant 0 : index
    %26 = vector.load %arg5[%c0_10, %c0_11] : memref<96x32xf32, #tpu.memory_space<vmem>>, vector<96x32xf32>
    %cst_12 = arith.constant dense<0.000000e+00> : vector<96x256xf32>
    %27 = tpu.matmul %26, %25, %cst_12 {dimension_numbers = #tpu.dot_dimension_numbers<[1], [0], [0], [1], [0, 0, 1, 1], [], []>} : vector<96x32xf32>, vector<32x256xf32>, vector<96x256xf32> -> vector<96x256xf32>
    %28 = vector.extract_strided_slice %27 {offsets = [0, 0], sizes = [32, 256], strides = [1, 1]} : vector<96x256xf32> to vector<32x256xf32>
    %29 = vector.extract_strided_slice %27 {offsets = [32, 0], sizes = [32, 256], strides = [1, 1]} : vector<96x256xf32> to vector<32x256xf32>
    %30 = vector.extract_strided_slice %27 {offsets = [64, 0], sizes = [32, 256], strides = [1, 1]} : vector<96x256xf32> to vector<32x256xf32>
    %cst_13 = arith.constant dense<0.000000e+00> : vector<256x256xf32>
    %31 = tpu.matmul %28, %29, %cst_13 {dimension_numbers = #tpu.dot_dimension_numbers<[0], [0], [1], [1], [0, 1, 1, 1], [], []>} : vector<32x256xf32>, vector<32x256xf32>, vector<256x256xf32> -> vector<256x256xf32>
    %cst_14 = arith.constant dense<0xFF800000> : vector<256xf32>
    %32 = vector.multi_reduction <maximumf>, %31, %cst_14 [1] : vector<256x256xf32> to vector<256xf32>
    %33 = vector.shape_cast %32 : vector<256xf32> to vector<256x1xf32>
    %34 = vector.broadcast %33 : vector<256x1xf32> to vector<256x256xf32>
    %35 = arith.subf %31, %34 : vector<256x256xf32>
    %36 = math.exp %35 : vector<256x256xf32>
    %cst_15 = arith.constant dense<0.000000e+00> : vector<256xf32>
    %37 = vector.multi_reduction <add>, %36, %cst_15 [1] : vector<256x256xf32> to vector<256xf32>
    %38 = vector.shape_cast %37 : vector<256xf32> to vector<256x1xf32>
    %39 = tpu.reciprocal %38 {approx = true} : vector<256x1xf32> -> vector<256x1xf32>
    %40 = arith.mulf %38, %39 : vector<256x1xf32>
    %cst_16 = arith.constant 2.000000e+00 : f32
    %41 = vector.broadcast %cst_16 : f32 to vector<256x1xf32>
    %42 = arith.subf %41, %40 : vector<256x1xf32>
    %43 = arith.mulf %39, %42 : vector<256x1xf32>
    %cst_17 = arith.constant 0.000000e+00 : f32
    %44 = vector.broadcast %cst_17 : f32 to vector<256x256xf32>
    %45 = arith.maximumf %31, %44 : vector<256x256xf32>
    %c0_18 = arith.constant 0 : index
    %46 = memref.load %arg1[%c0_18] : memref<2xf32, #tpu.memory_space<smem>>
    %47 = vector.broadcast %46 : f32 to vector<256x1xf32>
    %48 = arith.mulf %47, %43 : vector<256x1xf32>
    %49 = vector.broadcast %48 : vector<256x1xf32> to vector<256x256xf32>
    %50 = arith.mulf %36, %49 : vector<256x256xf32>
    %c1 = arith.constant 1 : index
    %51 = memref.load %arg1[%c1] : memref<2xf32, #tpu.memory_space<smem>>
    %52 = vector.broadcast %51 : f32 to vector<256x256xf32>
    %53 = arith.mulf %52, %45 : vector<256x256xf32>
    %54 = arith.mulf %45, %53 : vector<256x256xf32>
    %55 = arith.addf %50, %54 : vector<256x256xf32>
    %cst_19 = arith.constant dense<0.000000e+00> : vector<32x256xf32>
    %56 = tpu.matmul %30, %55, %cst_19 {dimension_numbers = #tpu.dot_dimension_numbers<[1], [1], [0], [0], [0, 0, 1, 0], [], []>} : vector<32x256xf32>, vector<256x256xf32>, vector<32x256xf32> -> vector<32x256xf32>
    %57 = arith.addf %56, %25 : vector<32x256xf32>
    %c0_20 = arith.constant 0 : index
    %c0_21 = arith.constant 0 : index
    %c0_22 = arith.constant 0 : index
    %58 = vector.load %arg6[%c0_20, %c0_21, %c0_22] : memref<1x32x256xf32, #tpu.memory_space<vmem>>, vector<1x32x256xf32>
    %59 = vector.shape_cast %58 : vector<1x32x256xf32> to vector<32x256xf32>
    %60 = vector.shape_cast %57 : vector<32x256xf32> to vector<1x32x256xf32>
    tpu.vector_store %arg6[%c0_20, %c0_21, %c0_22], %60 {strides = array<i32>} : memref<1x32x256xf32, #tpu.memory_space<vmem>>, vector<1x32x256xf32>,
    return
  }
  func.func @transform_0(%arg0: i32) -> i32 {
    %c0_i32 = arith.constant 0 : i32
    %c0_i32_0 = arith.constant 0 : i32
    return %c0_i32 : i32
  }
  func.func @transform_1(%arg0: i32) -> (i32, i32, i32) {
    %c0_i32 = arith.constant 0 : i32
    %c0_i32_0 = arith.constant 0 : i32
    %c0_i32_1 = arith.constant 0 : i32
    return %arg0, %c0_i32, %c0_i32_0 : i32, i32, i32
  }
  func.func @transform_2(%arg0: i32) -> (i32, i32) {
    %c0_i32 = arith.constant 0 : i32
    %c0_i32_0 = arith.constant 0 : i32
    %c0_i32_1 = arith.constant 0 : i32
    return %c0_i32, %c0_i32_0 : i32, i32
  }
  func.func @transform_3(%arg0: i32) -> (i32, i32) {
    %c0_i32 = arith.constant 0 : i32
    %c0_i32_0 = arith.constant 0 : i32
    %c0_i32_1 = arith.constant 0 : i32
    return %c0_i32, %c0_i32_0 : i32, i32
  }
  func.func @transform_4(%arg0: i32) -> (i32, i32) {
    %c0_i32 = arith.constant 0 : i32
    %c0_i32_0 = arith.constant 0 : i32
    %c0_i32_1 = arith.constant 0 : i32
    return %c0_i32, %c0_i32_0 : i32, i32
  }
  func.func @transform_5(%arg0: i32) -> (i32, i32, i32) {
    %c0_i32 = arith.constant 0 : i32
    %c0_i32_0 = arith.constant 0 : i32
    %c0_i32_1 = arith.constant 0 : i32
    return %arg0, %c0_i32, %c0_i32_0 : i32, i32, i32
  }
}

</mosaic_0001>

<llo_original>
// kernel: tpu_custom_call.1
$region0: #{tpu_custom_call.1}
  #allocation0 [shape = 'u32[]', space=smem, size = 0x4, offset = 0x4, fixed_abs, tag = 'smem constant byte address 0x4 - core index']
  #allocation1 [shape = 'u32[144,128]{1,0:T(1,128)}', space=vmem, size = 0x12000, scoped, tag = 'internal scratch']
  %s0 = inlined_call_operand.vmem [shape: f32[2], index: 0, kind: input, shape index: {}]
  %s1 = inlined_call_operand.vmem [shape: f32[2,32,256], index: 1, kind: input, shape index: {}]
  %s2 = inlined_call_operand.vmem [shape: f32[32,1], index: 2, kind: input, shape index: {}]
  %s3 = inlined_call_operand.vmem [shape: f32[32,1], index: 3, kind: input, shape index: {}]
  %s4 = inlined_call_operand.vmem [shape: f32[96,32], index: 4, kind: input, shape index: {}]
  %s5 = inlined_call_operand.hbm [shape: f32[2,32,256], index: 5, kind: output, shape index: {}]
  %s6 = sld [smem:[#allocation0]]
  $region57: #{tpu_custom_call.1} parent=0
    _
  %s8 = ssub.s32 1, %s6
  %s9 = scalar_select 0, %s8, %s6
  $region1: #{tpu_custom_call.1} parent=0
    #allocation2 [shape = 'u8[512]{0}', space=smem, size = 0x200, scoped, tag = 'input window, operand 0, single buffered']
    #allocation3 [shape = 's32[2]{0}', space=sflag, size = 0x8, scoped, tag = 'scoped memory for tpu_custom_call.1']
    #allocation4 [shape = 's32[2]{0}', space=sflag, size = 0x8, scoped, tag = 'scoped memory for tpu_custom_call.1']
    #allocation5 [shape = 'u8[65536]{0}', space=vmem, size = 0x10000, scoped, tag = 'output window, operand 0']
    %10 = vsyncpa [#allocation4], 0
    %11 = vsyncpa [#allocation3], 0
    %s12 = scalar_lea.sflag [#allocation3], 1
    %13 = vsyncpa %s12, 0
    loop: start=0, step=1, limit=4
    $region2: #{tpu_custom_call.1} parent=1 // loop_pre_header
      _
    $region3: #{tpu_custom_call.1} parent=1 // loop_header
      %s15 = sphi 0, %s19
      %p16 = scmp.ge.s32.totalorder %s15, 4
      %s23 = sphi 0, %s23
      %s25 = sphi 0, %s23
      %s26 = sphi 0, %s25
      %s40 = sphi 0, %s26
      %s46 = sphi 0, %s48
      %s49 = sphi 0, %s46
      %s50 = sphi 0, %s49
      %s66 = sphi 0, %s50
      %s70 = sphi 0, %s70
      %s72 = sphi 0, %s70
      %s73 = sphi 0, %s72
      %s87 = sphi 0, %s73
      %s91 = sphi 0, %s91
      %s93 = sphi 0, %s91
      %s94 = sphi 0, %s93
      %s108 = sphi 0, %s94
      %s112 = sphi 0, %s112
      %s114 = sphi 0, %s112
      %s115 = sphi 0, %s114
      %s129 = sphi 0, %s115
      %s135 = sphi 0, %s137
      %s138 = sphi 0, %s135
      %s139 = sphi 0, %s138
      %s155 = sphi 0, %s139
    $region4: #{tpu_custom_call.1} parent=1 // loop_header_branch
      %18 = sbr.rel (%p16) target = $region8
    $region5: #{tpu_custom_call.1} parent=1 // loop_body
      %s20 = ssub.s32 %s15, 1
      %s21 = ssub.s32 %s15, 2
      %s22 = sadd.s32 %s15, 1
      %s24 = sadd.s32 %s23, 1
      %p27 = scmp.eq.s32.totalorder %s15, 1
      %p28 = scmp.ne.s32.totalorder %s23, %s25
      %p29 = scmp.eq.s32.totalorder %s15, 0
      %p30 = por %p28, %p29
      %p31 = scmp.ne.s32.totalorder %s23, %s25
      %p32 = scmp.eq.s32.totalorder %s20, 1
      %p33 = por %p31, %p32
      %p34 = scmp.ne.s32.totalorder %s25, %s26
      %p35 = scmp.eq.s32.totalorder %s20, 0
      %p36 = por %p34, %p35
      %p37 = scmp.ne.s32.totalorder %s25, %s26
      %p38 = scmp.eq.s32.totalorder %s21, 1
      %p39 = por %p37, %p38
      %p41 = scmp.ne.s32.totalorder %s26, %s40
      %p42 = scmp.eq.s32.totalorder %s21, 0
      %p43 = por %p41, %p42
      %s44 = ssub.s32 %s15, %s22
      %p45 = scmp.eq.s32.totalorder %s44, 0
      %s47 = sadd.s32 %s46, 1
      %s48 = scalar_select %p45, %s46, %s47
      %p51 = pneg %p45
      %p52 = scmp.eq.s32.totalorder %s15, 1
      %p53 = por %p51, %p52
      %p54 = scmp.ne.s32.totalorder %s46, %s49
      %p55 = scmp.eq.s32.totalorder %s15, 0
      %p56 = por %p54, %p55
      %p57 = scmp.ne.s32.totalorder %s46, %s49
      %p58 = scmp.eq.s32.totalorder %s20, 1
      %p59 = por %p57, %p58
      %p60 = scmp.ne.s32.totalorder %s49, %s50
      %p61 = scmp.eq.s32.totalorder %s20, 0
      %p62 = por %p60, %p61
      %p63 = scmp.ne.s32.totalorder %s49, %s50
      %p64 = scmp.eq.s32.totalorder %s21, 1
      %p65 = por %p63, %p64
      %p67 = scmp.ne.s32.totalorder %s50, %s66
      %p68 = scmp.eq.s32.totalorder %s21, 0
      %p69 = por %p67, %p68
      %s71 = sadd.s32 %s70, 1
      %p74 = scmp.eq.s32.totalorder %s15, 1
      %p75 = scmp.ne.s32.totalorder %s70, %s72
      %p76 = scmp.eq.s32.totalorder %s15, 0
      %p77 = por %p75, %p76
      %p78 = scmp.ne.s32.totalorder %s70, %s72
      %p79 = scmp.eq.s32.totalorder %s20, 1
      %p80 = por %p78, %p79
      %p81 = scmp.ne.s32.totalorder %s72, %s73
      %p82 = scmp.eq.s32.totalorder %s20, 0
      %p83 = por %p81, %p82
      %p84 = scmp.ne.s32.totalorder %s72, %s73
      %p85 = scmp.eq.s32.totalorder %s21, 1
      %p86 = por %p84, %p85
      %p88 = scmp.ne.s32.totalorder %s73, %s87
      %p89 = scmp.eq.s32.totalorder %s21, 0
      %p90 = por %p88, %p89
      %s92 = sadd.s32 %s91, 1
      %p95 = scmp.eq.s32.totalorder %s15, 1
      %p96 = scmp.ne.s32.totalorder %s91, %s93
      %p97 = scmp.eq.s32.totalorder %s15, 0
      %p98 = por %p96, %p97
      %p99 = scmp.ne.s32.totalorder %s91, %s93
      %p100 = scmp.eq.s32.totalorder %s20, 1
      %p101 = por %p99, %p100
      %p102 = scmp.ne.s32.totalorder %s93, %s94
      %p103 = scmp.eq.s32.totalorder %s20, 0
      %p104 = por %p102, %p103
      %p105 = scmp.ne.s32.totalorder %s93, %s94
      %p106 = scmp.eq.s32.totalorder %s21, 1
      %p107 = por %p105, %p106
      %p109 = scmp.ne.s32.totalorder %s94, %s108
      %p110 = scmp.eq.s32.totalorder %s21, 0
      %p111 = por %p109, %p110
      %s113 = sadd.s32 %s112, 1
      %p116 = scmp.eq.s32.totalorder %s15, 1
      %p117 = scmp.ne.s32.totalorder %s112, %s114
      %p118 = scmp.eq.s32.totalorder %s15, 0
      %p119 = por %p117, %p118
      %p120 = scmp.ne.s32.totalorder %s112, %s114
      %p121 = scmp.eq.s32.totalorder %s20, 1
      %p122 = por %p120, %p121
      %p123 = scmp.ne.s32.totalorder %s114, %s115
      %p124 = scmp.eq.s32.totalorder %s20, 0
      %p125 = por %p123, %p124
      %p126 = scmp.ne.s32.totalorder %s114, %s115
      %p127 = scmp.eq.s32.totalorder %s21, 1
      %p128 = por %p126, %p127
      %p130 = scmp.ne.s32.totalorder %s115, %s129
      %p131 = scmp.eq.s32.totalorder %s21, 0
      %p132 = por %p130, %p131
      %s133 = ssub.s32 %s15, %s22
      %p134 = scmp.eq.s32.totalorder %s133, 0
      %s136 = sadd.s32 %s135, 1
      %s137 = scalar_select %p134, %s135, %s136
      %p140 = pneg %p134
      %p141 = scmp.eq.s32.totalorder %s15, 1
      %p142 = por %p140, %p141
      %p143 = scmp.ne.s32.totalorder %s135, %s138
      %p144 = scmp.eq.s32.totalorder %s15, 0
      %p145 = por %p143, %p144
      %p146 = scmp.ne.s32.totalorder %s135, %s138
      %p147 = scmp.eq.s32.totalorder %s20, 1
      %p148 = por %p146, %p147
      %p149 = scmp.ne.s32.totalorder %s138, %s139
      %p150 = scmp.eq.s32.totalorder %s20, 0
      %p151 = por %p149, %p150
      %p152 = scmp.ne.s32.totalorder %s138, %s139
      %p153 = scmp.eq.s32.totalorder %s21, 1
      %p154 = por %p152, %p153
      %p156 = scmp.ne.s32.totalorder %s139, %s155
      %p157 = scmp.eq.s32.totalorder %s21, 0
      %p158 = por %p156, %p157
      %p159 = scmp.le.s32.totalorder 1, %s15
      %p160 = scmp.lt.s32.totalorder %s15, 3
      %p161 = pnand %p159, %p160
      %p162 = pneg %p161
      // Predicated region
      $region9: #{tpu_custom_call.1} parent=5 // pred_check
        _
      $region10: #{tpu_custom_call.1} parent=5 // pred_check_branch
        %164 = sbr.rel (%p161) target = $region12
      $region11: #{tpu_custom_call.1} parent=5 // pred_region
        %s165 = ssub.s32 %s15, 1
        // Predicated region
        $region13: #{tpu_custom_call.1} parent=11 // pred_check
          %p166 = pneg %p36
        $region14: #{tpu_custom_call.1} parent=11 // pred_check_branch
          %168 = sbr.rel (%p166) target = $region16
        $region15: #{tpu_custom_call.1} parent=11 // pred_region
          %s170 = ssub.s32 16, 16
          %171 = vsyncadd [#allocation4], %s170
          %s173 = sshll.u32 %s0, 4
          %s174 = int_to_ptr.vmem [resolvable:$true] %s173
          %176 = dma.vmem_to_smem %s174, 16, [#allocation2], [#allocation4]
        $region16: #{tpu_custom_call.1} parent=11 // pred_fallthru
          _
        // Predicated region
        $region17: #{tpu_custom_call.1} parent=11 // pred_check
          %p177 = pneg %p83
        $region18: #{tpu_custom_call.1} parent=11 // pred_check_branch
          %179 = sbr.rel (%p177) target = $region20
        $region19: #{tpu_custom_call.1} parent=11 // pred_region
          _
        $region20: #{tpu_custom_call.1} parent=11 // pred_fallthru
          _
        // Predicated region
        $region21: #{tpu_custom_call.1} parent=11 // pred_check
          %p180 = pneg %p104
        $region22: #{tpu_custom_call.1} parent=11 // pred_check_branch
          %182 = sbr.rel (%p180) target = $region24
        $region23: #{tpu_custom_call.1} parent=11 // pred_region
          _
        $region24: #{tpu_custom_call.1} parent=11 // pred_fallthru
          _
        // Predicated region
        $region25: #{tpu_custom_call.1} parent=11 // pred_check
          %p183 = pneg %p125
        $region26: #{tpu_custom_call.1} parent=11 // pred_check_branch
          %185 = sbr.rel (%p183) target = $region28
        $region27: #{tpu_custom_call.1} parent=11 // pred_region
          _
        $region28: #{tpu_custom_call.1} parent=11 // pred_fallthru
          _
      $region12: #{tpu_custom_call.1} parent=5 // pred_fallthru
        _
      %p186 = scmp.lt.s32.totalorder %s15, 2
      // Predicated region
      $region29: #{tpu_custom_call.1} parent=5 // pred_check
        %p187 = pneg %p186
      $region30: #{tpu_custom_call.1} parent=5 // pred_check_branch
        %189 = sbr.rel (%p187) target = $region32
      $region31: #{tpu_custom_call.1} parent=5 // pred_region
        // Predicated region
        $region33: #{tpu_custom_call.1} parent=31 // pred_check
          %p190 = pneg %p56
        $region34: #{tpu_custom_call.1} parent=31 // pred_check_branch
          %192 = sbr.rel (%p190) target = $region36
        $region35: #{tpu_custom_call.1} parent=31 // pred_region
          %p193 = scmp.lt.s32.totalorder %s15, 1
          %s194 = scalar_select %p193, %s15, 1
          %s195 = smul.addr %s194, 8
          %s196 = smul.addr %s195, 8
          %s197 = scalar_lea.vmem %s1, %s196
        $region36: #{tpu_custom_call.1} parent=31 // pred_fallthru
          _
      $region32: #{tpu_custom_call.1} parent=5 // pred_fallthru
        _
      %p198 = scmp.le.s32.totalorder 1, %s15
      %p199 = scmp.lt.s32.totalorder %s15, 3
      %p200 = pnand %p198, %p199
      %p201 = pneg %p200
      // Predicated region
      $region37: #{tpu_custom_call.1} parent=5 // pred_check
        _
      $region38: #{tpu_custom_call.1} parent=5 // pred_check_branch
        %203 = sbr.rel (%p200) target = $region40
      $region39: #{tpu_custom_call.1} parent=5 // pred_region
        %s204 = ssub.s32 %s15, 1
        // Predicated region
        $region41: #{tpu_custom_call.1} parent=39 // pred_check
          %p205 = pneg %p36
        $region42: #{tpu_custom_call.1} parent=39 // pred_check_branch
          %207 = sbr.rel (%p205) target = $region44
        $region43: #{tpu_custom_call.1} parent=39 // pred_region
          %208 = dma.done [#allocation4], 16
        $region44: #{tpu_custom_call.1} parent=39 // pred_fallthru
          _
        %209 = sfence
        %p210 = pneg %p36
        %p211 = pneg %p33
        %p212 = scmp.lt.s32.totalorder %s20, 1
        %s213 = scalar_select %p212, %s20, 1
        %s214 = smul.addr %s213, 8
        %s215 = smul.addr %s214, 8
        %s216 = scalar_lea.vmem %s1, %s215
        %p217 = pneg %p62
        %p218 = pneg %p59
        %p219 = pneg %p83
        %p220 = pneg %p80
        %p221 = pneg %p104
        %p222 = pneg %p101
        %p223 = pneg %p125
        %p224 = pneg %p122
        %p225 = pneg %p151
        %p226 = pneg %p148
        %s227 = sand.u32 %s138, 1
        %s228 = scalar_lea.sflag [#allocation3], %s227
        %s229 = sand.u32 %s138, 1
        %s230 = smul.addr %s229, 64
        %s231 = scalar_lea.vmem [#allocation5], %s230
        %p232 = scmp.lt.s32.totalorder %s20, 1
        %s233 = scalar_select %p232, %s20, 1
        %s234 = smul.addr %s233, 8
        %s235 = smul.addr %s234, 8
        %s236 = scalar_lea.vmem %s1, %s235
        %v237 = vld [vmem:[%s236] sm:$0xff]
        %v238 = vld [vmem:[%s236 + $0x8] sm:$0xff]
        %v239 = vld [vmem:[%s236 + $0x10] sm:$0xff]
        %v240 = vld [vmem:[%s236 + $0x18] sm:$0xff]
        %v241 = vld [vmem:[%s236 + $0x20] sm:$0xff]
        %v242 = vld [vmem:[%s236 + $0x28] sm:$0xff]
        %v243 = vld [vmem:[%s236 + $0x30] sm:$0xff]
        %v244 = vld [vmem:[%s236 + $0x38] sm:$0xff]
        %v245 = vadd.f32 %v237, %v239
        %v246 = vadd.f32 %v245, %v241
        %v247 = vadd.f32 %v246, %v243
        %v248 = vrot.slane %v247, 4
        %v249 = vadd.f32 %v247, %v248
        %v250 = vrot.slane %v249, 2
        %v251 = vadd.f32 %v249, %v250
        %v252 = vrot.slane %v251, 1
        %v253 = vadd.f32 %v251, %v252
        %v254 = vadd.f32 %v238, %v240
        %v255 = vadd.f32 %v254, %v242
        %v256 = vadd.f32 %v255, %v244
        %v257 = vrot.slane %v256, 4
        %v258 = vadd.f32 %v256, %v257
        %v259 = vrot.slane %v258, 2
        %v260 = vadd.f32 %v258, %v259
        %v261 = vrot.slane %v260, 1
        %v262 = vadd.f32 %v260, %v261
        %v263 = vrcp.pop 32.0
        %v264 = vmul.f32 %v253, %v263
        %v265 = vmul.f32 %v262, %v263
        %v266 = vsub.f32 %v237, %v264
        %v267 = vsub.f32 %v238, %v265
        %v268 = vsub.f32 %v239, %v264
        %v269 = vsub.f32 %v240, %v265
        %v270 = vsub.f32 %v241, %v264
        %v271 = vsub.f32 %v242, %v265
        %v272 = vsub.f32 %v243, %v264
        %v273 = vsub.f32 %v244, %v265
        %v274 = vmul.f32 %v266, %v266
        %v275 = vmul.f32 %v267, %v267
        %v276 = vmul.f32 %v268, %v268
        %v277 = vmul.f32 %v269, %v269
        %v278 = vmul.f32 %v270, %v270
        %v279 = vmul.f32 %v271, %v271
        %v280 = vmul.f32 %v272, %v272
        %v281 = vmul.f32 %v273, %v273
        %v282 = vadd.f32 %v274, %v276
        %v283 = vadd.f32 %v282, %v278
        %v284 = vadd.f32 %v283, %v280
        %v285 = vrot.slane %v284, 4
        %v286 = vadd.f32 %v284, %v285
        %v287 = vrot.slane %v286, 2
        %v288 = vadd.f32 %v286, %v287
        %v289 = vrot.slane %v288, 1
        %v290 = vadd.f32 %v288, %v289
        %v291 = vadd.f32 %v275, %v277
        %v292 = vadd.f32 %v291, %v279
        %v293 = vadd.f32 %v292, %v281
        %v294 = vrot.slane %v293, 4
        %v295 = vadd.f32 %v293, %v294
        %v296 = vrot.slane %v295, 2
        %v297 = vadd.f32 %v295, %v296
        %v298 = vrot.slane %v297, 1
        %v299 = vadd.f32 %v297, %v298
        %v300 = vmul.f32 %v290, %v263
        %v301 = vmul.f32 %v299, %v263
        %v302 = vadd.f32 %v300, 1e-05
        %v303 = vadd.f32 %v301, 1e-05
        %v304 = vrsqrt.pop %v302
        %v305 = vrsqrt.pop %v303
        %v306 = vmul.f32 %v266, %v304
        %v307 = vmul.f32 %v267, %v305
        %v308 = vmul.f32 %v268, %v304
        %v309 = vmul.f32 %v269, %v305
        %v310 = vmul.f32 %v270, %v304
        %v311 = vmul.f32 %v271, %v305
        %v312 = vmul.f32 %v272, %v304
        %v313 = vmul.f32 %v273, %v305
        %v314 = vld [vmem:[%s2] sm:$0xff]
        %v315 = vld [vmem:[%s2 + $0x8] sm:$0xff]
        %v316 = vld [vmem:[%s2 + $0x10] sm:$0xff]
        %v317 = vld [vmem:[%s2 + $0x18] sm:$0xff]
        %319 = vset.pattern.permute.xlu0 0
        %320 = vperm.xlu0 %319, %v314
        %v321 = vpop.permute.xlu0 %320
        %324 = vset.pattern.permute.xlu0 0
        %325 = vperm.xlu0 %324, %v315
        %v326 = vpop.permute.xlu0 %325
        %329 = vset.pattern.permute.xlu0 0
        %330 = vperm.xlu0 %329, %v316
        %v331 = vpop.permute.xlu0 %330
        %334 = vset.pattern.permute.xlu0 0
        %335 = vperm.xlu0 %334, %v317
        %v336 = vpop.permute.xlu0 %335
        %v338 = vmul.f32 %v306, %v321
        %v339 = vmul.f32 %v307, %v321
        %v340 = vmul.f32 %v308, %v326
        %v341 = vmul.f32 %v309, %v326
        %v342 = vmul.f32 %v310, %v331
        %v343 = vmul.f32 %v311, %v331
        %v344 = vmul.f32 %v312, %v336
        %v345 = vmul.f32 %v313, %v336
        %v346 = vld [vmem:[%s3] sm:$0xff]
        %v347 = vld [vmem:[%s3 + $0x8] sm:$0xff]
        %v348 = vld [vmem:[%s3 + $0x10] sm:$0xff]
        %v349 = vld [vmem:[%s3 + $0x18] sm:$0xff]
        %351 = vset.pattern.permute.xlu0 0
        %352 = vperm.xlu0 %351, %v346
        %v353 = vpop.permute.xlu0 %352
        %356 = vset.pattern.permute.xlu0 0
        %357 = vperm.xlu0 %356, %v347
        %v358 = vpop.permute.xlu0 %357
        %361 = vset.pattern.permute.xlu0 0
        %362 = vperm.xlu0 %361, %v348
        %v363 = vpop.permute.xlu0 %362
        %366 = vset.pattern.permute.xlu0 0
        %367 = vperm.xlu0 %366, %v349
        %v368 = vpop.permute.xlu0 %367
        %v370 = vadd.f32 %v338, %v353
        %v371 = vadd.f32 %v339, %v353
        %v372 = vadd.f32 %v340, %v358
        %v373 = vadd.f32 %v341, %v358
        %v374 = vadd.f32 %v342, %v363
        %v375 = vadd.f32 %v343, %v363
        %v376 = vadd.f32 %v344, %v368
        %v377 = vadd.f32 %v345, %v368
        %v378 = vld [vmem:[%s4] sm:$0xff]
        %v379 = vld [vmem:[%s4 + $0x8] sm:$0xff]
        %v380 = vld [vmem:[%s4 + $0x10] sm:$0xff]
        %v381 = vld [vmem:[%s4 + $0x18] sm:$0xff]
        %v382 = vld [vmem:[%s4 + $0x20] sm:$0xff]
        %v383 = vld [vmem:[%s4 + $0x28] sm:$0xff]
        %v384 = vld [vmem:[%s4 + $0x30] sm:$0xff]
        %v385 = vld [vmem:[%s4 + $0x38] sm:$0xff]
        %v386 = vld [vmem:[%s4 + $0x40] sm:$0xff]
        %v387 = vld [vmem:[%s4 + $0x48] sm:$0xff]
        %v388 = vld [vmem:[%s4 + $0x50] sm:$0xff]
        %v389 = vld [vmem:[%s4 + $0x58] sm:$0xff]
        %vm390 = vcmask 261120
        %v392 = vsel %vm390, %v378, 0
        %v395 = vsel %vm390, %v379, 0
        %v398 = vsel %vm390, %v380, 0
        %v401 = vsel %vm390, %v381, 0
        %v404 = vsel %vm390, %v382, 0
        %v407 = vsel %vm390, %v383, 0
        %v410 = vsel %vm390, %v384, 0
        %v413 = vsel %vm390, %v385, 0
        %v416 = vsel %vm390, %v386, 0
        %v419 = vsel %vm390, %v387, 0
        %v422 = vsel %vm390, %v388, 0
        %v425 = vsel %vm390, %v389, 0
        %427 = vmatprep.subr.mxu0 0.0
        %428 = vmatpush1.msra.mxu0 0.0
        %429 = vmatprep.subr.mxu0 0.0
        %430 = vmatpush1.msra.mxu0 0.0
        %431 = vmatprep.subr.mxu0 0.0
        %432 = vmatpush1.msra.mxu0 0.0
        %433 = vmatprep.subr.mxu0 0.0
        %434 = vmatpush1.msra.mxu0 0.0
        %435 = vmatprep.subr.mxu0 0.0
        %436 = vmatpush1.msra.mxu0 0.0
        %437 = vmatprep.subr.mxu0 0.0
        %438 = vmatpush1.msra.mxu0 0.0
        %439 = vmatprep.subr.mxu0 0.0
        %440 = vmatpush1.msra.mxu0 0.0
        %441 = vmatprep.subr.mxu0 0.0
        %442 = vmatpush1.msra.mxu0 0.0
        %443 = vmatprep.subr.mxu0 0.0
        %444 = vmatpush1.msra.mxu0 0.0
        %445 = vmatprep.subr.mxu0 0.0
        %446 = vmatpush1.msra.mxu0 0.0
        %447 = vmatprep.subr.mxu0 0.0
        %448 = vmatpush1.msra.mxu0 0.0
        %449 = vmatprep.subr.mxu0 0.0
        %450 = vmatpush1.msra.mxu0 0.0
        %451 = vmatprep.subr.mxu0 %v377
        %452 = vmatpush1.msra.mxu0 %v376
        %453 = vmatprep.subr.mxu0 %v375
        %454 = vmatpush1.msra.mxu0 %v374
        %455 = vmatprep.subr.mxu0 %v373
        %456 = vmatpush1.msra.mxu0 %v372
        %457 = vmatprep.subr.mxu0 %v371
        %458 = vmatpush1.msra.mxu0 %v370
        %459 = vmatprep.subr.mxu0 0.0
        %460 = vmatpush2.msra.mxu0 0.0
        %461 = vmatprep.subr.mxu0 0.0
        %462 = vmatpush2.msra.mxu0 0.0
        %463 = vmatprep.subr.mxu0 0.0
        %464 = vmatpush2.msra.mxu0 0.0
        %465 = vmatprep.subr.mxu0 0.0
        %466 = vmatpush2.msra.mxu0 0.0
        %467 = vmatprep.subr.mxu0 0.0
        %468 = vmatpush2.msra.mxu0 0.0
        %469 = vmatprep.subr.mxu0 0.0
        %470 = vmatpush2.msra.mxu0 0.0
        %471 = vmatprep.subr.mxu0 0.0
        %472 = vmatpush2.msra.mxu0 0.0
        %473 = vmatprep.subr.mxu0 0.0
        %474 = vmatpush2.msra.mxu0 0.0
        %475 = vmatprep.subr.mxu0 0.0
        %476 = vmatpush2.msra.mxu0 0.0
        %477 = vmatprep.subr.mxu0 0.0
        %478 = vmatpush2.msra.mxu0 0.0
        %479 = vmatprep.subr.mxu0 0.0
        %480 = vmatpush2.msra.mxu0 0.0
        %481 = vmatprep.subr.mxu0 0.0
        %482 = vmatpush2.msra.mxu0 0.0
        %483 = vmatprep.subr.mxu0 0.0
        %484 = vmatpush2.msra.mxu0 0.0
        %485 = vmatprep.subr.mxu0 0.0
        %486 = vmatpush2.msra.mxu0 0.0
        %487 = vmatprep.subr.mxu0 0.0
        %488 = vmatpush2.msra.mxu0 0.0
        %489 = vmatprep.subr.mxu0 0.0
        %490 = vmatpush2.msra.mxu0 0.0
        %491 = vmatprep.mubr.f32.mxu0 0.0
        %492 = vmatmul.mubr.f32.gmra.mxu0 %v392
        %v493 = vpop.f32.mrf.mxu0
        %v494 = vadd.f32 0.0, %v493
        %v495 = vpop.f32.mrf.mxu0
        %v496 = vadd.f32 0.0, %v495
        %497 = vmatprep.mubr.f32.mxu0 0.0
        %498 = vmatmul.mubr.f32.gmra.mxu0 %v395
        %v499 = vpop.f32.mrf.mxu0
        %v500 = vadd.f32 0.0, %v499
        %v501 = vpop.f32.mrf.mxu0
        %v502 = vadd.f32 0.0, %v501
        %503 = vmatprep.mubr.f32.mxu0 0.0
        %504 = vmatmul.mubr.f32.gmra.mxu0 %v398
        %v505 = vpop.f32.mrf.mxu0
        %v506 = vadd.f32 0.0, %v505
        %v507 = vpop.f32.mrf.mxu0
        %v508 = vadd.f32 0.0, %v507
        %509 = vmatprep.mubr.f32.mxu0 0.0
        %510 = vmatmul.mubr.f32.gmra.mxu0 %v401
        %v511 = vpop.f32.mrf.mxu0
        %v512 = vadd.f32 0.0, %v511
        %v513 = vpop.f32.mrf.mxu0
        %v514 = vadd.f32 0.0, %v513
        %515 = vmatprep.mubr.f32.mxu0 0.0
        %516 = vmatmul.mubr.f32.gmra.mxu0 %v404
        %v517 = vpop.f32.mrf.mxu0
        %v518 = vadd.f32 0.0, %v517
        %v519 = vpop.f32.mrf.mxu0
        %v520 = vadd.f32 0.0, %v519
        %521 = vmatprep.mubr.f32.mxu0 0.0
        %522 = vmatmul.mubr.f32.gmra.mxu0 %v407
        %v523 = vpop.f32.mrf.mxu0
        %v524 = vadd.f32 0.0, %v523
        %v525 = vpop.f32.mrf.mxu0
        %v526 = vadd.f32 0.0, %v525
        %527 = vmatprep.mubr.f32.mxu0 0.0
        %528 = vmatmul.mubr.f32.gmra.mxu0 %v410
        %v529 = vpop.f32.mrf.mxu0
        %v530 = vadd.f32 0.0, %v529
        %v531 = vpop.f32.mrf.mxu0
        %v532 = vadd.f32 0.0, %v531
        %533 = vmatprep.mubr.f32.mxu0 0.0
        %534 = vmatmul.mubr.f32.gmra.mxu0 %v413
        %v535 = vpop.f32.mrf.mxu0
        %v536 = vadd.f32 0.0, %v535
        %v537 = vpop.f32.mrf.mxu0
        %v538 = vadd.f32 0.0, %v537
        %539 = vmatprep.mubr.f32.mxu0 0.0
        %540 = vmatmul.mubr.f32.gmra.mxu0 %v416
        %v541 = vpop.f32.mrf.mxu0
        %v542 = vadd.f32 0.0, %v541
        %v543 = vpop.f32.mrf.mxu0
        %v544 = vadd.f32 0.0, %v543
        %545 = vmatprep.mubr.f32.mxu0 0.0
        %546 = vmatmul.mubr.f32.gmra.mxu0 %v419
        %v547 = vpop.f32.mrf.mxu0
        %v548 = vadd.f32 0.0, %v547
        %v549 = vpop.f32.mrf.mxu0
        %v550 = vadd.f32 0.0, %v549
        %551 = vmatprep.mubr.f32.mxu0 0.0
        %552 = vmatmul.mubr.f32.gmra.mxu0 %v422
        %v553 = vpop.f32.mrf.mxu0
        %v554 = vadd.f32 0.0, %v553
        %v555 = vpop.f32.mrf.mxu0
        %v556 = vadd.f32 0.0, %v555
        %557 = vmatprep.mubr.f32.mxu0 0.0
        %558 = vmatmul.mubr.f32.gmra.mxu0 %v425
        %v559 = vpop.f32.mrf.mxu0
        %v560 = vadd.f32 0.0, %v559
        %v561 = vpop.f32.mrf.mxu0
        %v562 = vadd.f32 0.0, %v561
        %563 = vdwg.mxu0
        %564 = vxpose.xlu0.b32.start [1/16] %v494, 128
        %565 = vxpose.xlu0.b32.cont [2/16] %v500, 128
        %566 = vxpose.xlu0.b32.cont [3/16] %v506, 128
        %567 = vxpose.xlu0.b32.cont [4/16] %v512, 128
        %568 = vxpose.xlu0.b32.cont [5/16] 0.0, 128
        %569 = vxpose.xlu0.b32.cont [6/16] 0.0, 128
        %570 = vxpose.xlu0.b32.cont [7/16] 0.0, 128
        %571 = vxpose.xlu0.b32.cont [8/16] 0.0, 128
        %572 = vxpose.xlu0.b32.cont [9/16] 0.0, 128
        %573 = vxpose.xlu0.b32.cont [10/16] 0.0, 128
        %574 = vxpose.xlu0.b32.cont [11/16] 0.0, 128
        %575 = vxpose.xlu0.b32.cont [12/16] 0.0, 128
        %576 = vxpose.xlu0.b32.cont [13/16] 0.0, 128
        %577 = vxpose.xlu0.b32.cont [14/16] 0.0, 128
        %578 = vxpose.xlu0.b32.cont [15/16] 0.0, 128
        %579 = vxpose.xlu0.b32.end [16/16] 0.0, 128
        %v580 = vpop.trf.xlu0
        %v581 = vpop.trf.xlu0
        %v582 = vpop.trf.xlu0
        %v583 = vpop.trf.xlu0
        %v584 = vpop.trf.xlu0
        %v585 = vpop.trf.xlu0
        %v586 = vpop.trf.xlu0
        %v587 = vpop.trf.xlu0
        %v588 = vpop.trf.xlu0
        %v589 = vpop.trf.xlu0
        %v590 = vpop.trf.xlu0
        %v591 = vpop.trf.xlu0
        %v592 = vpop.trf.xlu0
        %v593 = vpop.trf.xlu0
        %v594 = vpop.trf.xlu0
        %v595 = vpop.trf.xlu0
        %596 = vxpose.xlu0.b32.start [1/16] %v496, 128
        %597 = vxpose.xlu0.b32.cont [2/16] %v502, 128
        %598 = vxpose.xlu0.b32.cont [3/16] %v508, 128
        %599 = vxpose.xlu0.b32.cont [4/16] %v514, 128
        %600 = vxpose.xlu0.b32.cont [5/16] 0.0, 128
        %601 = vxpose.xlu0.b32.cont [6/16] 0.0, 128
        %602 = vxpose.xlu0.b32.cont [7/16] 0.0, 128
        %603 = vxpose.xlu0.b32.cont [8/16] 0.0, 128
        %604 = vxpose.xlu0.b32.cont [9/16] 0.0, 128
        %605 = vxpose.xlu0.b32.cont [10/16] 0.0, 128
        %606 = vxpose.xlu0.b32.cont [11/16] 0.0, 128
        %607 = vxpose.xlu0.b32.cont [12/16] 0.0, 128
        %608 = vxpose.xlu0.b32.cont [13/16] 0.0, 128
        %609 = vxpose.xlu0.b32.cont [14/16] 0.0, 128
        %610 = vxpose.xlu0.b32.cont [15/16] 0.0, 128
        %611 = vxpose.xlu0.b32.end [16/16] 0.0, 128
        %v612 = vpop.trf.xlu0
        %v613 = vpop.trf.xlu0
        %v614 = vpop.trf.xlu0
        %v615 = vpop.trf.xlu0
        %v616 = vpop.trf.xlu0
        %v617 = vpop.trf.xlu0
        %v618 = vpop.trf.xlu0
        %v619 = vpop.trf.xlu0
        %v620 = vpop.trf.xlu0
        %v621 = vpop.trf.xlu0
        %v622 = vpop.trf.xlu0
        %v623 = vpop.trf.xlu0
        %v624 = vpop.trf.xlu0
        %v625 = vpop.trf.xlu0
        %v626 = vpop.trf.xlu0
        %v627 = vpop.trf.xlu0
        %v629 = vsel %vm390, %v580, 0
        %v632 = vsel %vm390, %v581, 0
        %v635 = vsel %vm390, %v582, 0
        %v638 = vsel %vm390, %v583, 0
        %v641 = vsel %vm390, %v584, 0
        %v644 = vsel %vm390, %v585, 0
        %v647 = vsel %vm390, %v586, 0
        %v650 = vsel %vm390, %v587, 0
        %v653 = vsel %vm390, %v588, 0
        %v656 = vsel %vm390, %v589, 0
        %v659 = vsel %vm390, %v590, 0
        %v662 = vsel %vm390, %v591, 0
        %v665 = vsel %vm390, %v592, 0
        %v668 = vsel %vm390, %v593, 0
        %v671 = vsel %vm390, %v594, 0
        %v674 = vsel %vm390, %v595, 0
        %v677 = vsel %vm390, %v612, 0
        %v680 = vsel %vm390, %v613, 0
        %v683 = vsel %vm390, %v614, 0
        %v686 = vsel %vm390, %v615, 0
        %v689 = vsel %vm390, %v616, 0
        %v692 = vsel %vm390, %v617, 0
        %v695 = vsel %vm390, %v618, 0
        %v698 = vsel %vm390, %v619, 0
        %v701 = vsel %vm390, %v620, 0
        %v704 = vsel %vm390, %v621, 0
        %v707 = vsel %vm390, %v622, 0
        %v710 = vsel %vm390, %v623, 0
        %v713 = vsel %vm390, %v624, 0
        %v716 = vsel %vm390, %v625, 0
        %v719 = vsel %vm390, %v626, 0
        %v722 = vsel %vm390, %v627, 0
        %724 = vmatprep.subr.mxu0 0.0
        %725 = vmatpush1.msra.mxu0 0.0
        %726 = vmatprep.subr.mxu0 0.0
        %727 = vmatpush1.msra.mxu0 0.0
        %728 = vmatprep.subr.mxu0 0.0
        %729 = vmatpush1.msra.mxu0 0.0
        %730 = vmatprep.subr.mxu0 0.0
        %731 = vmatpush1.msra.mxu0 0.0
        %732 = vmatprep.subr.mxu0 0.0
        %733 = vmatpush1.msra.mxu0 0.0
        %734 = vmatprep.subr.mxu0 0.0
        %735 = vmatpush1.msra.mxu0 0.0
        %736 = vmatprep.subr.mxu0 0.0
        %737 = vmatpush1.msra.mxu0 0.0
        %738 = vmatprep.subr.mxu0 0.0
        %739 = vmatpush1.msra.mxu0 0.0
        %740 = vmatprep.subr.mxu0 0.0
        %741 = vmatpush1.msra.mxu0 0.0
        %742 = vmatprep.subr.mxu0 0.0
        %743 = vmatpush1.msra.mxu0 0.0
        %744 = vmatprep.subr.mxu0 0.0
        %745 = vmatpush1.msra.mxu0 0.0
        %746 = vmatprep.subr.mxu0 0.0
        %747 = vmatpush1.msra.mxu0 0.0
        %748 = vmatprep.subr.mxu0 %v538
        %749 = vmatpush1.msra.mxu0 %v536
        %750 = vmatprep.subr.mxu0 %v532
        %751 = vmatpush1.msra.mxu0 %v530
        %752 = vmatprep.subr.mxu0 %v526
        %753 = vmatpush1.msra.mxu0 %v524
        %754 = vmatprep.subr.mxu0 %v520
        %755 = vmatpush1.msra.mxu0 %v518
        %756 = vmatprep.subr.mxu0 0.0
        %757 = vmatpush2.msra.mxu0 0.0
        %758 = vmatprep.subr.mxu0 0.0
        %759 = vmatpush2.msra.mxu0 0.0
        %760 = vmatprep.subr.mxu0 0.0
        %761 = vmatpush2.msra.mxu0 0.0
        %762 = vmatprep.subr.mxu0 0.0
        %763 = vmatpush2.msra.mxu0 0.0
        %764 = vmatprep.subr.mxu0 0.0
        %765 = vmatpush2.msra.mxu0 0.0
        %766 = vmatprep.subr.mxu0 0.0
        %767 = vmatpush2.msra.mxu0 0.0
        %768 = vmatprep.subr.mxu0 0.0
        %769 = vmatpush2.msra.mxu0 0.0
        %770 = vmatprep.subr.mxu0 0.0
        %771 = vmatpush2.msra.mxu0 0.0
        %772 = vmatprep.subr.mxu0 0.0
        %773 = vmatpush2.msra.mxu0 0.0
        %774 = vmatprep.subr.mxu0 0.0
        %775 = vmatpush2.msra.mxu0 0.0
        %776 = vmatprep.subr.mxu0 0.0
        %777 = vmatpush2.msra.mxu0 0.0
        %778 = vmatprep.subr.mxu0 0.0
        %779 = vmatpush2.msra.mxu0 0.0
        %780 = vmatprep.subr.mxu0 0.0
        %781 = vmatpush2.msra.mxu0 0.0
        %782 = vmatprep.subr.mxu0 0.0
        %783 = vmatpush2.msra.mxu0 0.0
        %784 = vmatprep.subr.mxu0 0.0
        %785 = vmatpush2.msra.mxu0 0.0
        %786 = vmatprep.subr.mxu0 0.0
        %787 = vmatpush2.msra.mxu0 0.0
        %788 = vmatprep.mubr.f32.mxu0 0.0
        %789 = vmatmul.mubr.f32.gmra.mxu0 %v629
        %v790 = vpop.f32.mrf.mxu0
        %v791 = vadd.f32 0.0, %v790
        %v792 = vpop.f32.mrf.mxu0
        %v793 = vadd.f32 0.0, %v792
        %794 = vmatprep.mubr.f32.mxu0 0.0
        %795 = vmatmul.mubr.f32.gmra.mxu0 %v632
        %v796 = vpop.f32.mrf.mxu0
        %v797 = vadd.f32 0.0, %v796
        %v798 = vpop.f32.mrf.mxu0
        %v799 = vadd.f32 0.0, %v798
        %800 = vmatprep.mubr.f32.mxu0 0.0
        %801 = vmatmul.mubr.f32.gmra.mxu0 %v635
        %v802 = vpop.f32.mrf.mxu0
        %v803 = vadd.f32 0.0, %v802
        %v804 = vpop.f32.mrf.mxu0
        %v805 = vadd.f32 0.0, %v804
        %806 = vmatprep.mubr.f32.mxu0 0.0
        %807 = vmatmul.mubr.f32.gmra.mxu0 %v638
        %v808 = vpop.f32.mrf.mxu0
        %v809 = vadd.f32 0.0, %v808
        %v810 = vpop.f32.mrf.mxu0
        %v811 = vadd.f32 0.0, %v810
        %812 = vmatprep.mubr.f32.mxu0 0.0
        %813 = vmatmul.mubr.f32.gmra.mxu0 %v641
        %v814 = vpop.f32.mrf.mxu0
        %v815 = vadd.f32 0.0, %v814
        %v816 = vpop.f32.mrf.mxu0
        %v817 = vadd.f32 0.0, %v816
        %818 = vmatprep.mubr.f32.mxu0 0.0
        %819 = vmatmul.mubr.f32.gmra.mxu0 %v644
        %v820 = vpop.f32.mrf.mxu0
        %v821 = vadd.f32 0.0, %v820
        %v822 = vpop.f32.mrf.mxu0
        %v823 = vadd.f32 0.0, %v822
        %824 = vmatprep.mubr.f32.mxu0 0.0
        %825 = vmatmul.mubr.f32.gmra.mxu0 %v647
        %v826 = vpop.f32.mrf.mxu0
        %v827 = vadd.f32 0.0, %v826
        %v828 = vpop.f32.mrf.mxu0
        %v829 = vadd.f32 0.0, %v828
        %830 = vmatprep.mubr.f32.mxu0 0.0
        %831 = vmatmul.mubr.f32.gmra.mxu0 %v650
        %v832 = vpop.f32.mrf.mxu0
        %v833 = vadd.f32 0.0, %v832
        %v834 = vpop.f32.mrf.mxu0
        %v835 = vadd.f32 0.0, %v834
        %836 = vmatprep.mubr.f32.mxu0 0.0
        %837 = vmatmul.mubr.f32.gmra.mxu0 %v653
        %v838 = vpop.f32.mrf.mxu0
        %v839 = vadd.f32 0.0, %v838
        %v840 = vpop.f32.mrf.mxu0
        %v841 = vadd.f32 0.0, %v840
        %842 = vmatprep.mubr.f32.mxu0 0.0
        %843 = vmatmul.mubr.f32.gmra.mxu0 %v656
        %v844 = vpop.f32.mrf.mxu0
        %v845 = vadd.f32 0.0, %v844
        %v846 = vpop.f32.mrf.mxu0
        %v847 = vadd.f32 0.0, %v846
        %848 = vmatprep.mubr.f32.mxu0 0.0
        %849 = vmatmul.mubr.f32.gmra.mxu0 %v659
        %v850 = vpop.f32.mrf.mxu0
        %v851 = vadd.f32 0.0, %v850
        %v852 = vpop.f32.mrf.mxu0
        %v853 = vadd.f32 0.0, %v852
        %854 = vmatprep.mubr.f32.mxu0 0.0
        %855 = vmatmul.mubr.f32.gmra.mxu0 %v662
        %v856 = vpop.f32.mrf.mxu0
        %v857 = vadd.f32 0.0, %v856
        %v858 = vpop.f32.mrf.mxu0
        %v859 = vadd.f32 0.0, %v858
        %860 = vmatprep.mubr.f32.mxu0 0.0
        %861 = vmatmul.mubr.f32.gmra.mxu0 %v665
        %v862 = vpop.f32.mrf.mxu0
        %v863 = vadd.f32 0.0, %v862
        %v864 = vpop.f32.mrf.mxu0
        %v865 = vadd.f32 0.0, %v864
        %866 = vmatprep.mubr.f32.mxu0 0.0
        %867 = vmatmul.mubr.f32.gmra.mxu0 %v668
        %v868 = vpop.f32.mrf.mxu0
        %v869 = vadd.f32 0.0, %v868
        %v870 = vpop.f32.mrf.mxu0
        %v871 = vadd.f32 0.0, %v870
        %872 = vmatprep.mubr.f32.mxu0 0.0
        %873 = vmatmul.mubr.f32.gmra.mxu0 %v671
        %v874 = vpop.f32.mrf.mxu0
        %v875 = vadd.f32 0.0, %v874
        %v876 = vpop.f32.mrf.mxu0
        %v877 = vadd.f32 0.0, %v876
        %878 = vmatprep.mubr.f32.mxu0 0.0
        %879 = vmatmul.mubr.f32.gmra.mxu0 %v674
        %v880 = vpop.f32.mrf.mxu0
        %v881 = vadd.f32 0.0, %v880
        %v882 = vpop.f32.mrf.mxu0
        %v883 = vadd.f32 0.0, %v882
        %884 = vmatprep.mubr.f32.mxu0 0.0
        %885 = vmatmul.mubr.f32.gmra.mxu0 %v677
        %v886 = vpop.f32.mrf.mxu0
        %v887 = vadd.f32 0.0, %v886
        %v888 = vpop.f32.mrf.mxu0
        %v889 = vadd.f32 0.0, %v888
        %890 = vmatprep.mubr.f32.mxu0 0.0
        %891 = vmatmul.mubr.f32.gmra.mxu0 %v680
        %v892 = vpop.f32.mrf.mxu0
        %v893 = vadd.f32 0.0, %v892
        %v894 = vpop.f32.mrf.mxu0
        %v895 = vadd.f32 0.0, %v894
        %896 = vmatprep.mubr.f32.mxu0 0.0
        %897 = vmatmul.mubr.f32.gmra.mxu0 %v683
        %v898 = vpop.f32.mrf.mxu0
        %v899 = vadd.f32 0.0, %v898
        %v900 = vpop.f32.mrf.mxu0
        %v901 = vadd.f32 0.0, %v900
        %902 = vmatprep.mubr.f32.mxu0 0.0
        %903 = vmatmul.mubr.f32.gmra.mxu0 %v686
        %v904 = vpop.f32.mrf.mxu0
        %v905 = vadd.f32 0.0, %v904
        %v906 = vpop.f32.mrf.mxu0
        %v907 = vadd.f32 0.0, %v906
        %908 = vmatprep.mubr.f32.mxu0 0.0
        %909 = vmatmul.mubr.f32.gmra.mxu0 %v689
        %v910 = vpop.f32.mrf.mxu0
        %v911 = vadd.f32 0.0, %v910
        %v912 = vpop.f32.mrf.mxu0
        %v913 = vadd.f32 0.0, %v912
        %914 = vmatprep.mubr.f32.mxu0 0.0
        %915 = vmatmul.mubr.f32.gmra.mxu0 %v692
        %v916 = vpop.f32.mrf.mxu0
        %v917 = vadd.f32 0.0, %v916
        %v918 = vpop.f32.mrf.mxu0
        %v919 = vadd.f32 0.0, %v918
        %920 = vmatprep.mubr.f32.mxu0 0.0
        %921 = vmatmul.mubr.f32.gmra.mxu0 %v695
        %v922 = vpop.f32.mrf.mxu0
        %v923 = vadd.f32 0.0, %v922
        %v924 = vpop.f32.mrf.mxu0
        %v925 = vadd.f32 0.0, %v924
        %926 = vmatprep.mubr.f32.mxu0 0.0
        %927 = vmatmul.mubr.f32.gmra.mxu0 %v698
        %v928 = vpop.f32.mrf.mxu0
        %v929 = vadd.f32 0.0, %v928
        %v930 = vpop.f32.mrf.mxu0
        %v931 = vadd.f32 0.0, %v930
        %932 = vmatprep.mubr.f32.mxu0 0.0
        %933 = vmatmul.mubr.f32.gmra.mxu0 %v701
        %v934 = vpop.f32.mrf.mxu0
        %v935 = vadd.f32 0.0, %v934
        %v936 = vpop.f32.mrf.mxu0
        %v937 = vadd.f32 0.0, %v936
        %938 = vmatprep.mubr.f32.mxu0 0.0
        %939 = vmatmul.mubr.f32.gmra.mxu0 %v704
        %v940 = vpop.f32.mrf.mxu0
        %v941 = vadd.f32 0.0, %v940
        %v942 = vpop.f32.mrf.mxu0
        %v943 = vadd.f32 0.0, %v942
        %944 = vmatprep.mubr.f32.mxu0 0.0
        %945 = vmatmul.mubr.f32.gmra.mxu0 %v707
        %v946 = vpop.f32.mrf.mxu0
        %v947 = vadd.f32 0.0, %v946
        %v948 = vpop.f32.mrf.mxu0
        %v949 = vadd.f32 0.0, %v948
        %950 = vmatprep.mubr.f32.mxu0 0.0
        %951 = vmatmul.mubr.f32.gmra.mxu0 %v710
        %v952 = vpop.f32.mrf.mxu0
        %v953 = vadd.f32 0.0, %v952
        %v954 = vpop.f32.mrf.mxu0
        %v955 = vadd.f32 0.0, %v954
        %956 = vmatprep.mubr.f32.mxu0 0.0
        %957 = vmatmul.mubr.f32.gmra.mxu0 %v713
        %v958 = vpop.f32.mrf.mxu0
        %v959 = vadd.f32 0.0, %v958
        %v960 = vpop.f32.mrf.mxu0
        %v961 = vadd.f32 0.0, %v960
        %962 = vmatprep.mubr.f32.mxu0 0.0
        %963 = vmatmul.mubr.f32.gmra.mxu0 %v716
        %v964 = vpop.f32.mrf.mxu0
        %v965 = vadd.f32 0.0, %v964
        %v966 = vpop.f32.mrf.mxu0
        %v967 = vadd.f32 0.0, %v966
        %968 = vmatprep.mubr.f32.mxu0 0.0
        %969 = vmatmul.mubr.f32.gmra.mxu0 %v719
        %v970 = vpop.f32.mrf.mxu0
        %v971 = vadd.f32 0.0, %v970
        %v972 = vpop.f32.mrf.mxu0
        %v973 = vadd.f32 0.0, %v972
        %974 = vmatprep.mubr.f32.mxu0 0.0
        %975 = vmatmul.mubr.f32.gmra.mxu0 %v722
        %v976 = vpop.f32.mrf.mxu0
        %v977 = vadd.f32 0.0, %v976
        %v978 = vpop.f32.mrf.mxu0
        %v979 = vadd.f32 0.0, %v978
        %980 = vdwg.mxu0
        %v981 = vmax.f32 %v791, %v793
        %982 = vmax.xlane.f32.xlu0 %v981
        %v983 = vpop.xlane.xlu0 %982
        %v984 = vmax.f32 %v797, %v799
        %985 = vmax.xlane.f32.xlu0 %v984
        %v986 = vpop.xlane.xlu0 %985
        %v987 = vmax.f32 %v803, %v805
        %988 = vmax.xlane.f32.xlu0 %v987
        %v989 = vpop.xlane.xlu0 %988
        %v990 = vmax.f32 %v809, %v811
        %991 = vmax.xlane.f32.xlu0 %v990
        %v992 = vpop.xlane.xlu0 %991
        %v993 = vmax.f32 %v815, %v817
        %994 = vmax.xlane.f32.xlu0 %v993
        %v995 = vpop.xlane.xlu0 %994
        %v996 = vmax.f32 %v821, %v823
        %997 = vmax.xlane.f32.xlu0 %v996
        %v998 = vpop.xlane.xlu0 %997
        %v999 = vmax.f32 %v827, %v829
        %1000 = vmax.xlane.f32.xlu0 %v999
        %v1001 = vpop.xlane.xlu0 %1000
        %v1002 = vmax.f32 %v833, %v835
        %1003 = vmax.xlane.f32.xlu0 %v1002
        %v1004 = vpop.xlane.xlu0 %1003
        %v1005 = vmax.f32 %v839, %v841
        %1006 = vmax.xlane.f32.xlu0 %v1005
        %v1007 = vpop.xlane.xlu0 %1006
        %v1008 = vmax.f32 %v845, %v847
        %1009 = vmax.xlane.f32.xlu0 %v1008
        %v1010 = vpop.xlane.xlu0 %1009
        %v1011 = vmax.f32 %v851, %v853
        %1012 = vmax.xlane.f32.xlu0 %v1011
        %v1013 = vpop.xlane.xlu0 %1012
        %v1014 = vmax.f32 %v857, %v859
        %1015 = vmax.xlane.f32.xlu0 %v1014
        %v1016 = vpop.xlane.xlu0 %1015
        %v1017 = vmax.f32 %v863, %v865
        %1018 = vmax.xlane.f32.xlu0 %v1017
        %v1019 = vpop.xlane.xlu0 %1018
        %v1020 = vmax.f32 %v869, %v871
        %1021 = vmax.xlane.f32.xlu0 %v1020
        %v1022 = vpop.xlane.xlu0 %1021
        %v1023 = vmax.f32 %v875, %v877
        %1024 = vmax.xlane.f32.xlu0 %v1023
        %v1025 = vpop.xlane.xlu0 %1024
        %v1026 = vmax.f32 %v881, %v883
        %1027 = vmax.xlane.f32.xlu0 %v1026
        %v1028 = vpop.xlane.xlu0 %1027
        %v1029 = vmax.f32 %v887, %v889
        %1030 = vmax.xlane.f32.xlu0 %v1029
        %v1031 = vpop.xlane.xlu0 %1030
        %v1032 = vmax.f32 %v893, %v895
        %1033 = vmax.xlane.f32.xlu0 %v1032
        %v1034 = vpop.xlane.xlu0 %1033
        %v1035 = vmax.f32 %v899, %v901
        %1036 = vmax.xlane.f32.xlu0 %v1035
        %v1037 = vpop.xlane.xlu0 %1036
        %v1038 = vmax.f32 %v905, %v907
        %1039 = vmax.xlane.f32.xlu0 %v1038
        %v1040 = vpop.xlane.xlu0 %1039
        %v1041 = vmax.f32 %v911, %v913
        %1042 = vmax.xlane.f32.xlu0 %v1041
        %v1043 = vpop.xlane.xlu0 %1042
        %v1044 = vmax.f32 %v917, %v919
        %1045 = vmax.xlane.f32.xlu0 %v1044
        %v1046 = vpop.xlane.xlu0 %1045
        %v1047 = vmax.f32 %v923, %v925
        %1048 = vmax.xlane.f32.xlu0 %v1047
        %v1049 = vpop.xlane.xlu0 %1048
        %v1050 = vmax.f32 %v929, %v931
        %1051 = vmax.xlane.f32.xlu0 %v1050
        %v1052 = vpop.xlane.xlu0 %1051
        %v1053 = vmax.f32 %v935, %v937
        %1054 = vmax.xlane.f32.xlu0 %v1053
        %v1055 = vpop.xlane.xlu0 %1054
        %v1056 = vmax.f32 %v941, %v943
        %1057 = vmax.xlane.f32.xlu0 %v1056
        %v1058 = vpop.xlane.xlu0 %1057
        %v1059 = vmax.f32 %v947, %v949
        %1060 = vmax.xlane.f32.xlu0 %v1059
        %v1061 = vpop.xlane.xlu0 %1060
        %v1062 = vmax.f32 %v953, %v955
        %1063 = vmax.xlane.f32.xlu0 %v1062
        %v1064 = vpop.xlane.xlu0 %1063
        %v1065 = vmax.f32 %v959, %v961
        %1066 = vmax.xlane.f32.xlu0 %v1065
        %v1067 = vpop.xlane.xlu0 %1066
        %v1068 = vmax.f32 %v965, %v967
        %1069 = vmax.xlane.f32.xlu0 %v1068
        %v1070 = vpop.xlane.xlu0 %1069
        %v1071 = vmax.f32 %v971, %v973
        %1072 = vmax.xlane.f32.xlu0 %v1071
        %v1073 = vpop.xlane.xlu0 %1072
        %v1074 = vmax.f32 %v977, %v979
        %1075 = vmax.xlane.f32.xlu0 %v1074
        %v1076 = vpop.xlane.xlu0 %1075
        %v1077 = vsub.f32 %v791, %v983
        %v1078 = vsub.f32 %v793, %v983
        %v1079 = vsub.f32 %v797, %v986
        %v1080 = vsub.f32 %v799, %v986
        %v1081 = vsub.f32 %v803, %v989
        %v1082 = vsub.f32 %v805, %v989
        %v1083 = vsub.f32 %v809, %v992
        %v1084 = vsub.f32 %v811, %v992
        %v1085 = vsub.f32 %v815, %v995
        %v1086 = vsub.f32 %v817, %v995
        %v1087 = vsub.f32 %v821, %v998
        %v1088 = vsub.f32 %v823, %v998
        %v1089 = vsub.f32 %v827, %v1001
        %v1090 = vsub.f32 %v829, %v1001
        %v1091 = vsub.f32 %v833, %v1004
        %v1092 = vsub.f32 %v835, %v1004
        %v1093 = vsub.f32 %v839, %v1007
        %v1094 = vsub.f32 %v841, %v1007
        %v1095 = vsub.f32 %v845, %v1010
        %v1096 = vsub.f32 %v847, %v1010
        %v1097 = vsub.f32 %v851, %v1013
        %v1098 = vsub.f32 %v853, %v1013
        %v1099 = vsub.f32 %v857, %v1016
        %v1100 = vsub.f32 %v859, %v1016
        %v1101 = vsub.f32 %v863, %v1019
        %v1102 = vsub.f32 %v865, %v1019
        %v1103 = vsub.f32 %v869, %v1022
        %v1104 = vsub.f32 %v871, %v1022
        %v1105 = vsub.f32 %v875, %v1025
        %v1106 = vsub.f32 %v877, %v1025
        %v1107 = vsub.f32 %v881, %v1028
        %v1108 = vsub.f32 %v883, %v1028
        %v1109 = vsub.f32 %v887, %v1031
        %v1110 = vsub.f32 %v889, %v1031
        %v1111 = vsub.f32 %v893, %v1034
        %v1112 = vsub.f32 %v895, %v1034
        %v1113 = vsub.f32 %v899, %v1037
        %v1114 = vsub.f32 %v901, %v1037
        %v1115 = vsub.f32 %v905, %v1040
        %v1116 = vsub.f32 %v907, %v1040
        %v1117 = vsub.f32 %v911, %v1043
        %v1118 = vsub.f32 %v913, %v1043
        %v1119 = vsub.f32 %v917, %v1046
        %v1120 = vsub.f32 %v919, %v1046
        %v1121 = vsub.f32 %v923, %v1049
        %v1122 = vsub.f32 %v925, %v1049
        %v1123 = vsub.f32 %v929, %v1052
        %v1124 = vsub.f32 %v931, %v1052
        %v1125 = vsub.f32 %v935, %v1055
        %v1126 = vsub.f32 %v937, %v1055
        %v1127 = vsub.f32 %v941, %v1058
        %v1128 = vsub.f32 %v943, %v1058
        %v1129 = vsub.f32 %v947, %v1061
        %v1130 = vsub.f32 %v949, %v1061
        %v1131 = vsub.f32 %v953, %v1064
        %v1132 = vsub.f32 %v955, %v1064
        %v1133 = vsub.f32 %v959, %v1067
        %v1134 = vsub.f32 %v961, %v1067
        %v1135 = vsub.f32 %v965, %v1070
        %v1136 = vsub.f32 %v967, %v1070
        %v1137 = vsub.f32 %v971, %v1073
        %v1138 = vsub.f32 %v973, %v1073
        %v1139 = vsub.f32 %v977, %v1076
        %v1140 = vsub.f32 %v979, %v1076
        %v1141 = vmul.f32 %v1077, 1.442695
        %v1142 = vpow.pop %v1141
        %v1143 = vmul.f32 %v1078, 1.442695
        %v1144 = vpow.pop %v1143
        %v1145 = vmul.f32 %v1079, 1.442695
        %v1146 = vpow.pop %v1145
        %v1147 = vmul.f32 %v1080, 1.442695
        %v1148 = vpow.pop %v1147
        %v1149 = vmul.f32 %v1081, 1.442695
        %v1150 = vpow.pop %v1149
        %v1151 = vmul.f32 %v1082, 1.442695
        %v1152 = vpow.pop %v1151
        %v1153 = vmul.f32 %v1083, 1.442695
        %v1154 = vpow.pop %v1153
        %v1155 = vmul.f32 %v1084, 1.442695
        %v1156 = vpow.pop %v1155
        %v1157 = vmul.f32 %v1085, 1.442695
        %v1158 = vpow.pop %v1157
        %v1159 = vmul.f32 %v1086, 1.442695
        %v1160 = vpow.pop %v1159
        %v1161 = vmul.f32 %v1087, 1.442695
        %v1162 = vpow.pop %v1161
        %v1163 = vmul.f32 %v1088, 1.442695
        %v1164 = vpow.pop %v1163
        %v1165 = vmul.f32 %v1089, 1.442695
        %v1166 = vpow.pop %v1165
        %v1167 = vmul.f32 %v1090, 1.442695
        %v1168 = vpow.pop %v1167
        %v1169 = vmul.f32 %v1091, 1.442695
        %v1170 = vpow.pop %v1169
        %v1171 = vmul.f32 %v1092, 1.442695
        %v1172 = vpow.pop %v1171
        %v1173 = vmul.f32 %v1093, 1.442695
        %v1174 = vpow.pop %v1173
        %v1175 = vmul.f32 %v1094, 1.442695
        %v1176 = vpow.pop %v1175
        %v1177 = vmul.f32 %v1095, 1.442695
        %v1178 = vpow.pop %v1177
        %v1179 = vmul.f32 %v1096, 1.442695
        %v1180 = vpow.pop %v1179
        %v1181 = vmul.f32 %v1097, 1.442695
        %v1182 = vpow.pop %v1181
        %v1183 = vmul.f32 %v1098, 1.442695
        %v1184 = vpow.pop %v1183
        %v1185 = vmul.f32 %v1099, 1.442695
        %v1186 = vpow.pop %v1185
        %v1187 = vmul.f32 %v1100, 1.442695
        %v1188 = vpow.pop %v1187
        %v1189 = vmul.f32 %v1101, 1.442695
        %v1190 = vpow.pop %v1189
        %v1191 = vmul.f32 %v1102, 1.442695
        %v1192 = vpow.pop %v1191
        %v1193 = vmul.f32 %v1103, 1.442695
        %v1194 = vpow.pop %v1193
        %v1195 = vmul.f32 %v1104, 1.442695
        %v1196 = vpow.pop %v1195
        %v1197 = vmul.f32 %v1105, 1.442695
        %v1198 = vpow.pop %v1197
        %v1199 = vmul.f32 %v1106, 1.442695
        %v1200 = vpow.pop %v1199
        %v1201 = vmul.f32 %v1107, 1.442695
        %v1202 = vpow.pop %v1201
        %v1203 = vmul.f32 %v1108, 1.442695
        %v1204 = vpow.pop %v1203
        %v1205 = vmul.f32 %v1109, 1.442695
        %v1206 = vpow.pop %v1205
        %v1207 = vmul.f32 %v1110, 1.442695
        %v1208 = vpow.pop %v1207
        %v1209 = vmul.f32 %v1111, 1.442695
        %v1210 = vpow.pop %v1209
        %v1211 = vmul.f32 %v1112, 1.442695
        %v1212 = vpow.pop %v1211
        %v1213 = vmul.f32 %v1113, 1.442695
        %v1214 = vpow.pop %v1213
        %v1215 = vmul.f32 %v1114, 1.442695
        %v1216 = vpow.pop %v1215
        %v1217 = vmul.f32 %v1115, 1.442695
        %v1218 = vpow.pop %v1217
        %v1219 = vmul.f32 %v1116, 1.442695
        %v1220 = vpow.pop %v1219
        %v1221 = vmul.f32 %v1117, 1.442695
        %v1222 = vpow.pop %v1221
        %v1223 = vmul.f32 %v1118, 1.442695
        %v1224 = vpow.pop %v1223
        %v1225 = vmul.f32 %v1119, 1.442695
        %v1226 = vpow.pop %v1225
        %v1227 = vmul.f32 %v1120, 1.442695
        %v1228 = vpow.pop %v1227
        %v1229 = vmul.f32 %v1121, 1.442695
        %v1230 = vpow.pop %v1229
        %v1231 = vmul.f32 %v1122, 1.442695
        %v1232 = vpow.pop %v1231
        %v1233 = vmul.f32 %v1123, 1.442695
        %v1234 = vpow.pop %v1233
        %v1235 = vmul.f32 %v1124, 1.442695
        %v1236 = vpow.pop %v1235
        %v1237 = vmul.f32 %v1125, 1.442695
        %v1238 = vpow.pop %v1237
        %v1239 = vmul.f32 %v1126, 1.442695
        %v1240 = vpow.pop %v1239
        %v1241 = vmul.f32 %v1127, 1.442695
        %v1242 = vpow.pop %v1241
        %v1243 = vmul.f32 %v1128, 1.442695
        %v1244 = vpow.pop %v1243
        %v1245 = vmul.f32 %v1129, 1.442695
        %v1246 = vpow.pop %v1245
        %v1247 = vmul.f32 %v1130, 1.442695
        %v1248 = vpow.pop %v1247
        %v1249 = vmul.f32 %v1131, 1.442695
        %v1250 = vpow.pop %v1249
        %v1251 = vmul.f32 %v1132, 1.442695
        %v1252 = vpow.pop %v1251
        %v1253 = vmul.f32 %v1133, 1.442695
        %v1254 = vpow.pop %v1253
        %v1255 = vmul.f32 %v1134, 1.442695
        %v1256 = vpow.pop %v1255
        %v1257 = vmul.f32 %v1135, 1.442695
        %v1258 = vpow.pop %v1257
        %v1259 = vmul.f32 %v1136, 1.442695
        %v1260 = vpow.pop %v1259
        %v1261 = vmul.f32 %v1137, 1.442695
        %v1262 = vpow.pop %v1261
        %v1263 = vmul.f32 %v1138, 1.442695
        %v1264 = vpow.pop %v1263
        %v1265 = vmul.f32 %v1139, 1.442695
        %v1266 = vpow.pop %v1265
        %v1267 = vmul.f32 %v1140, 1.442695
        %v1268 = vpow.pop %v1267
        %v1269 = vadd.f32 %v1142, %v1144
        %1270 = vadd.xlane.f32.xlu0 %v1269
        %v1271 = vpop.xlane.xlu0 %1270
        %v1272 = vadd.f32 %v1146, %v1148
        %1273 = vadd.xlane.f32.xlu0 %v1272
        %v1274 = vpop.xlane.xlu0 %1273
        %v1275 = vadd.f32 %v1150, %v1152
        %1276 = vadd.xlane.f32.xlu0 %v1275
        %v1277 = vpop.xlane.xlu0 %1276
        %v1278 = vadd.f32 %v1154, %v1156
        %1279 = vadd.xlane.f32.xlu0 %v1278
        %v1280 = vpop.xlane.xlu0 %1279
        %v1281 = vadd.f32 %v1158, %v1160
        %1282 = vadd.xlane.f32.xlu0 %v1281
        %v1283 = vpop.xlane.xlu0 %1282
        %v1284 = vadd.f32 %v1162, %v1164
        %1285 = vadd.xlane.f32.xlu0 %v1284
        %v1286 = vpop.xlane.xlu0 %1285
        %v1287 = vadd.f32 %v1166, %v1168
        %1288 = vadd.xlane.f32.xlu0 %v1287
        %v1289 = vpop.xlane.xlu0 %1288
        %v1290 = vadd.f32 %v1170, %v1172
        %1291 = vadd.xlane.f32.xlu0 %v1290
        %v1292 = vpop.xlane.xlu0 %1291
        %v1293 = vadd.f32 %v1174, %v1176
        %1294 = vadd.xlane.f32.xlu0 %v1293
        %v1295 = vpop.xlane.xlu0 %1294
        %v1296 = vadd.f32 %v1178, %v1180
        %1297 = vadd.xlane.f32.xlu0 %v1296
        %v1298 = vpop.xlane.xlu0 %1297
        %v1299 = vadd.f32 %v1182, %v1184
        %1300 = vadd.xlane.f32.xlu0 %v1299
        %v1301 = vpop.xlane.xlu0 %1300
        %v1302 = vadd.f32 %v1186, %v1188
        %1303 = vadd.xlane.f32.xlu0 %v1302
        %v1304 = vpop.xlane.xlu0 %1303
        %v1305 = vadd.f32 %v1190, %v1192
        %1306 = vadd.xlane.f32.xlu0 %v1305
        %v1307 = vpop.xlane.xlu0 %1306
        %v1308 = vadd.f32 %v1194, %v1196
        %1309 = vadd.xlane.f32.xlu0 %v1308
        %v1310 = vpop.xlane.xlu0 %1309
        %v1311 = vadd.f32 %v1198, %v1200
        %1312 = vadd.xlane.f32.xlu0 %v1311
        %v1313 = vpop.xlane.xlu0 %1312
        %v1314 = vadd.f32 %v1202, %v1204
        %1315 = vadd.xlane.f32.xlu0 %v1314
        %v1316 = vpop.xlane.xlu0 %1315
        %v1317 = vadd.f32 %v1206, %v1208
        %1318 = vadd.xlane.f32.xlu0 %v1317
        %v1319 = vpop.xlane.xlu0 %1318
        %v1320 = vadd.f32 %v1210, %v1212
        %1321 = vadd.xlane.f32.xlu0 %v1320
        %v1322 = vpop.xlane.xlu0 %1321
        %v1323 = vadd.f32 %v1214, %v1216
        %1324 = vadd.xlane.f32.xlu0 %v1323
        %v1325 = vpop.xlane.xlu0 %1324
        %v1326 = vadd.f32 %v1218, %v1220
        %1327 = vadd.xlane.f32.xlu0 %v1326
        %v1328 = vpop.xlane.xlu0 %1327
        %v1329 = vadd.f32 %v1222, %v1224
        %1330 = vadd.xlane.f32.xlu0 %v1329
        %v1331 = vpop.xlane.xlu0 %1330
        %v1332 = vadd.f32 %v1226, %v1228
        %1333 = vadd.xlane.f32.xlu0 %v1332
        %v1334 = vpop.xlane.xlu0 %1333
        %v1335 = vadd.f32 %v1230, %v1232
        %1336 = vadd.xlane.f32.xlu0 %v1335
        %v1337 = vpop.xlane.xlu0 %1336
        %v1338 = vadd.f32 %v1234, %v1236
        %1339 = vadd.xlane.f32.xlu0 %v1338
        %v1340 = vpop.xlane.xlu0 %1339
        %v1341 = vadd.f32 %v1238, %v1240
        %1342 = vadd.xlane.f32.xlu0 %v1341
        %v1343 = vpop.xlane.xlu0 %1342
        %v1344 = vadd.f32 %v1242, %v1244
        %1345 = vadd.xlane.f32.xlu0 %v1344
        %v1346 = vpop.xlane.xlu0 %1345
        %v1347 = vadd.f32 %v1246, %v1248
        %1348 = vadd.xlane.f32.xlu0 %v1347
        %v1349 = vpop.xlane.xlu0 %1348
        %v1350 = vadd.f32 %v1250, %v1252
        %1351 = vadd.xlane.f32.xlu0 %v1350
        %v1352 = vpop.xlane.xlu0 %1351
        %v1353 = vadd.f32 %v1254, %v1256
        %1354 = vadd.xlane.f32.xlu0 %v1353
        %v1355 = vpop.xlane.xlu0 %1354
        %v1356 = vadd.f32 %v1258, %v1260
        %1357 = vadd.xlane.f32.xlu0 %v1356
        %v1358 = vpop.xlane.xlu0 %1357
        %v1359 = vadd.f32 %v1262, %v1264
        %1360 = vadd.xlane.f32.xlu0 %v1359
        %v1361 = vpop.xlane.xlu0 %1360
        %v1362 = vadd.f32 %v1266, %v1268
        %1363 = vadd.xlane.f32.xlu0 %v1362
        %v1364 = vpop.xlane.xlu0 %1363
        %v1365 = vrcp.pop %v1271
        %v1366 = vrcp.pop %v1274
        %v1367 = vrcp.pop %v1277
        %v1368 = vrcp.pop %v1280
        %v1369 = vrcp.pop %v1283
        %v1370 = vrcp.pop %v1286
        %v1371 = vrcp.pop %v1289
        %v1372 = vrcp.pop %v1292
        %v1373 = vrcp.pop %v1295
        %v1374 = vrcp.pop %v1298
        %v1375 = vrcp.pop %v1301
        %v1376 = vrcp.pop %v1304
        %v1377 = vrcp.pop %v1307
        %v1378 = vrcp.pop %v1310
        %v1379 = vrcp.pop %v1313
        %v1380 = vrcp.pop %v1316
        %v1381 = vrcp.pop %v1319
        %v1382 = vrcp.pop %v1322
        %v1383 = vrcp.pop %v1325
        %v1384 = vrcp.pop %v1328
        %v1385 = vrcp.pop %v1331
        %v1386 = vrcp.pop %v1334
        %v1387 = vrcp.pop %v1337
        %v1388 = vrcp.pop %v1340
        %v1389 = vrcp.pop %v1343
        %v1390 = vrcp.pop %v1346
        %v1391 = vrcp.pop %v1349
        %v1392 = vrcp.pop %v1352
        %v1393 = vrcp.pop %v1355
        %v1394 = vrcp.pop %v1358
        %v1395 = vrcp.pop %v1361
        %v1396 = vrcp.pop %v1364
        %v1397 = vmul.f32 %v1271, %v1365
        %v1398 = vmul.f32 %v1274, %v1366
        %v1399 = vmul.f32 %v1277, %v1367
        %v1400 = vmul.f32 %v1280, %v1368
        %v1401 = vmul.f32 %v1283, %v1369
        %v1402 = vmul.f32 %v1286, %v1370
        %v1403 = vmul.f32 %v1289, %v1371
        %v1404 = vmul.f32 %v1292, %v1372
        %v1405 = vmul.f32 %v1295, %v1373
        %v1406 = vmul.f32 %v1298, %v1374
        %v1407 = vmul.f32 %v1301, %v1375
        %v1408 = vmul.f32 %v1304, %v1376
        %v1409 = vmul.f32 %v1307, %v1377
        %v1410 = vmul.f32 %v1310, %v1378
        %v1411 = vmul.f32 %v1313, %v1379
        %v1412 = vmul.f32 %v1316, %v1380
        %v1413 = vmul.f32 %v1319, %v1381
        %v1414 = vmul.f32 %v1322, %v1382
        %v1415 = vmul.f32 %v1325, %v1383
        %v1416 = vmul.f32 %v1328, %v1384
        %v1417 = vmul.f32 %v1331, %v1385
        %v1418 = vmul.f32 %v1334, %v1386
        %v1419 = vmul.f32 %v1337, %v1387
        %v1420 = vmul.f32 %v1340, %v1388
        %v1421 = vmul.f32 %v1343, %v1389
        %v1422 = vmul.f32 %v1346, %v1390
        %v1423 = vmul.f32 %v1349, %v1391
        %v1424 = vmul.f32 %v1352, %v1392
        %v1425 = vmul.f32 %v1355, %v1393
        %v1426 = vmul.f32 %v1358, %v1394
        %v1427 = vmul.f32 %v1361, %v1395
        %v1428 = vmul.f32 %v1364, %v1396
        %v1429 = vsub.f32 2.0, %v1397
        %v1430 = vsub.f32 2.0, %v1398
        %v1431 = vsub.f32 2.0, %v1399
        %v1432 = vsub.f32 2.0, %v1400
        %v1433 = vsub.f32 2.0, %v1401
        %v1434 = vsub.f32 2.0, %v1402
        %v1435 = vsub.f32 2.0, %v1403
        %v1436 = vsub.f32 2.0, %v1404
        %v1437 = vsub.f32 2.0, %v1405
        %v1438 = vsub.f32 2.0, %v1406
        %v1439 = vsub.f32 2.0, %v1407
        %v1440 = vsub.f32 2.0, %v1408
        %v1441 = vsub.f32 2.0, %v1409
        %v1442 = vsub.f32 2.0, %v1410
        %v1443 = vsub.f32 2.0, %v1411
        %v1444 = vsub.f32 2.0, %v1412
        %v1445 = vsub.f32 2.0, %v1413
        %v1446 = vsub.f32 2.0, %v1414
        %v1447 = vsub.f32 2.0, %v1415
        %v1448 = vsub.f32 2.0, %v1416
        %v1449 = vsub.f32 2.0, %v1417
        %v1450 = vsub.f32 2.0, %v1418
        %v1451 = vsub.f32 2.0, %v1419
        %v1452 = vsub.f32 2.0, %v1420
        %v1453 = vsub.f32 2.0, %v1421
        %v1454 = vsub.f32 2.0, %v1422
        %v1455 = vsub.f32 2.0, %v1423
        %v1456 = vsub.f32 2.0, %v1424
        %v1457 = vsub.f32 2.0, %v1425
        %v1458 = vsub.f32 2.0, %v1426
        %v1459 = vsub.f32 2.0, %v1427
        %v1460 = vsub.f32 2.0, %v1428
        %v1461 = vmul.f32 %v1365, %v1429
        %v1462 = vmul.f32 %v1366, %v1430
        %v1463 = vmul.f32 %v1367, %v1431
        %v1464 = vmul.f32 %v1368, %v1432
        %v1465 = vmul.f32 %v1369, %v1433
        %v1466 = vmul.f32 %v1370, %v1434
        %v1467 = vmul.f32 %v1371, %v1435
        %v1468 = vmul.f32 %v1372, %v1436
        %v1469 = vmul.f32 %v1373, %v1437
        %v1470 = vmul.f32 %v1374, %v1438
        %v1471 = vmul.f32 %v1375, %v1439
        %v1472 = vmul.f32 %v1376, %v1440
        %v1473 = vmul.f32 %v1377, %v1441
        %v1474 = vmul.f32 %v1378, %v1442
        %v1475 = vmul.f32 %v1379, %v1443
        %v1476 = vmul.f32 %v1380, %v1444
        %v1477 = vmul.f32 %v1381, %v1445
        %v1478 = vmul.f32 %v1382, %v1446
        %v1479 = vmul.f32 %v1383, %v1447
        %v1480 = vmul.f32 %v1384, %v1448
        %v1481 = vmul.f32 %v1385, %v1449
        %v1482 = vmul.f32 %v1386, %v1450
        %v1483 = vmul.f32 %v1387, %v1451
        %v1484 = vmul.f32 %v1388, %v1452
        %v1485 = vmul.f32 %v1389, %v1453
        %v1486 = vmul.f32 %v1390, %v1454
        %v1487 = vmul.f32 %v1391, %v1455
        %v1488 = vmul.f32 %v1392, %v1456
        %v1489 = vmul.f32 %v1393, %v1457
        %v1490 = vmul.f32 %v1394, %v1458
        %v1491 = vmul.f32 %v1395, %v1459
        %v1492 = vmul.f32 %v1396, %v1460
        %v1493 = vmax.f32 %v791, 0.0
        %v1494 = vmax.f32 %v793, 0.0
        %v1495 = vmax.f32 %v797, 0.0
        %v1496 = vmax.f32 %v799, 0.0
        %v1497 = vmax.f32 %v803, 0.0
        %v1498 = vmax.f32 %v805, 0.0
        %v1499 = vmax.f32 %v809, 0.0
        %v1500 = vmax.f32 %v811, 0.0
        %v1501 = vmax.f32 %v815, 0.0
        %v1502 = vmax.f32 %v817, 0.0
        %v1503 = vmax.f32 %v821, 0.0
        %v1504 = vmax.f32 %v823, 0.0
        %v1505 = vmax.f32 %v827, 0.0
        %v1506 = vmax.f32 %v829, 0.0
        %v1507 = vmax.f32 %v833, 0.0
        %v1508 = vmax.f32 %v835, 0.0
        %v1509 = vmax.f32 %v839, 0.0
        %v1510 = vmax.f32 %v841, 0.0
        %v1511 = vmax.f32 %v845, 0.0
        %v1512 = vmax.f32 %v847, 0.0
        %v1513 = vmax.f32 %v851, 0.0
        %v1514 = vmax.f32 %v853, 0.0
        %v1515 = vmax.f32 %v857, 0.0
        %v1516 = vmax.f32 %v859, 0.0
        %v1517 = vmax.f32 %v863, 0.0
        %v1518 = vmax.f32 %v865, 0.0
        %v1519 = vmax.f32 %v869, 0.0
        %v1520 = vmax.f32 %v871, 0.0
        %v1521 = vmax.f32 %v875, 0.0
        %v1522 = vmax.f32 %v877, 0.0
        %v1523 = vmax.f32 %v881, 0.0
        %v1524 = vmax.f32 %v883, 0.0
        %v1525 = vmax.f32 %v887, 0.0
        %v1526 = vmax.f32 %v889, 0.0
        %v1527 = vmax.f32 %v893, 0.0
        %v1528 = vmax.f32 %v895, 0.0
        %v1529 = vmax.f32 %v899, 0.0
        %v1530 = vmax.f32 %v901, 0.0
        %v1531 = vmax.f32 %v905, 0.0
        %v1532 = vmax.f32 %v907, 0.0
        %v1533 = vmax.f32 %v911, 0.0
        %v1534 = vmax.f32 %v913, 0.0
        %v1535 = vmax.f32 %v917, 0.0
        %v1536 = vmax.f32 %v919, 0.0
        %v1537 = vmax.f32 %v923, 0.0
        %v1538 = vmax.f32 %v925, 0.0
        %v1539 = vmax.f32 %v929, 0.0
        %v1540 = vmax.f32 %v931, 0.0
        %v1541 = vmax.f32 %v935, 0.0
        %v1542 = vmax.f32 %v937, 0.0
        %v1543 = vmax.f32 %v941, 0.0
        %v1544 = vmax.f32 %v943, 0.0
        %v1545 = vmax.f32 %v947, 0.0
        %v1546 = vmax.f32 %v949, 0.0
        %v1547 = vmax.f32 %v953, 0.0
        %v1548 = vmax.f32 %v955, 0.0
        %v1549 = vmax.f32 %v959, 0.0
        %v1550 = vmax.f32 %v961, 0.0
        %v1551 = vmax.f32 %v965, 0.0
        %v1552 = vmax.f32 %v967, 0.0
        %v1553 = vmax.f32 %v971, 0.0
        %v1554 = vmax.f32 %v973, 0.0
        %v1555 = vmax.f32 %v977, 0.0
        %v1556 = vmax.f32 %v979, 0.0
        %s1557 = sld [smem:[#allocation2]]
        %v1558 = vstv %s1557
        %v1559 = vmul.f32 %v1558, %v1461
        %v1560 = vmul.f32 %v1558, %v1462
        %v1561 = vmul.f32 %v1558, %v1463
        %v1562 = vmul.f32 %v1558, %v1464
        %v1563 = vmul.f32 %v1558, %v1465
        %v1564 = vmul.f32 %v1558, %v1466
        %v1565 = vmul.f32 %v1558, %v1467
        %v1566 = vmul.f32 %v1558, %v1468
        %v1567 = vmul.f32 %v1558, %v1469
        %v1568 = vmul.f32 %v1558, %v1470
        %v1569 = vmul.f32 %v1558, %v1471
        %v1570 = vmul.f32 %v1558, %v1472
        %v1571 = vmul.f32 %v1558, %v1473
        %v1572 = vmul.f32 %v1558, %v1474
        %v1573 = vmul.f32 %v1558, %v1475
        %v1574 = vmul.f32 %v1558, %v1476
        %v1575 = vmul.f32 %v1558, %v1477
        %v1576 = vmul.f32 %v1558, %v1478
        %v1577 = vmul.f32 %v1558, %v1479
        %v1578 = vmul.f32 %v1558, %v1480
        %v1579 = vmul.f32 %v1558, %v1481
        %v1580 = vmul.f32 %v1558, %v1482
        %v1581 = vmul.f32 %v1558, %v1483
        %v1582 = vmul.f32 %v1558, %v1484
        %v1583 = vmul.f32 %v1558, %v1485
        %v1584 = vmul.f32 %v1558, %v1486
        %v1585 = vmul.f32 %v1558, %v1487
        %v1586 = vmul.f32 %v1558, %v1488
        %v1587 = vmul.f32 %v1558, %v1489
        %v1588 = vmul.f32 %v1558, %v1490
        %v1589 = vmul.f32 %v1558, %v1491
        %v1590 = vmul.f32 %v1558, %v1492
        %v1591 = vmul.f32 %v1142, %v1559
        %v1592 = vmul.f32 %v1144, %v1559
        %v1593 = vmul.f32 %v1146, %v1560
        %v1594 = vmul.f32 %v1148, %v1560
        %v1595 = vmul.f32 %v1150, %v1561
        %v1596 = vmul.f32 %v1152, %v1561
        %v1597 = vmul.f32 %v1154, %v1562
        %v1598 = vmul.f32 %v1156, %v1562
        %v1599 = vmul.f32 %v1158, %v1563
        %v1600 = vmul.f32 %v1160, %v1563
        %v1601 = vmul.f32 %v1162, %v1564
        %v1602 = vmul.f32 %v1164, %v1564
        %v1603 = vmul.f32 %v1166, %v1565
        %v1604 = vmul.f32 %v1168, %v1565
        %v1605 = vmul.f32 %v1170, %v1566
        %v1606 = vmul.f32 %v1172, %v1566
        %v1607 = vmul.f32 %v1174, %v1567
        %v1608 = vmul.f32 %v1176, %v1567
        %v1609 = vmul.f32 %v1178, %v1568
        %v1610 = vmul.f32 %v1180, %v1568
        %v1611 = vmul.f32 %v1182, %v1569
        %v1612 = vmul.f32 %v1184, %v1569
        %v1613 = vmul.f32 %v1186, %v1570
        %v1614 = vmul.f32 %v1188, %v1570
        %v1615 = vmul.f32 %v1190, %v1571
        %v1616 = vmul.f32 %v1192, %v1571
        %v1617 = vmul.f32 %v1194, %v1572
        %v1618 = vmul.f32 %v1196, %v1572
        %v1619 = vmul.f32 %v1198, %v1573
        %v1620 = vmul.f32 %v1200, %v1573
        %v1621 = vmul.f32 %v1202, %v1574
        %v1622 = vmul.f32 %v1204, %v1574
        %v1623 = vmul.f32 %v1206, %v1575
        %v1624 = vmul.f32 %v1208, %v1575
        %v1625 = vmul.f32 %v1210, %v1576
        %v1626 = vmul.f32 %v1212, %v1576
        %v1627 = vmul.f32 %v1214, %v1577
        %v1628 = vmul.f32 %v1216, %v1577
        %v1629 = vmul.f32 %v1218, %v1578
        %v1630 = vmul.f32 %v1220, %v1578
        %v1631 = vmul.f32 %v1222, %v1579
        %v1632 = vmul.f32 %v1224, %v1579
        %v1633 = vmul.f32 %v1226, %v1580
        %v1634 = vmul.f32 %v1228, %v1580
        %v1635 = vmul.f32 %v1230, %v1581
        %v1636 = vmul.f32 %v1232, %v1581
        %v1637 = vmul.f32 %v1234, %v1582
        %v1638 = vmul.f32 %v1236, %v1582
        %v1639 = vmul.f32 %v1238, %v1583
        %v1640 = vmul.f32 %v1240, %v1583
        %v1641 = vmul.f32 %v1242, %v1584
        %v1642 = vmul.f32 %v1244, %v1584
        %v1643 = vmul.f32 %v1246, %v1585
        %v1644 = vmul.f32 %v1248, %v1585
        %v1645 = vmul.f32 %v1250, %v1586
        %v1646 = vmul.f32 %v1252, %v1586
        %v1647 = vmul.f32 %v1254, %v1587
        %v1648 = vmul.f32 %v1256, %v1587
        %v1649 = vmul.f32 %v1258, %v1588
        %v1650 = vmul.f32 %v1260, %v1588
        %v1651 = vmul.f32 %v1262, %v1589
        %v1652 = vmul.f32 %v1264, %v1589
        %v1653 = vmul.f32 %v1266, %v1590
        %v1654 = vmul.f32 %v1268, %v1590
        %s1655 = sld [smem:[#allocation2 + $0x1]]
        %v1656 = vstv %s1655
        %v1657 = vmul.f32 %v1656, %v1493
        %v1658 = vmul.f32 %v1656, %v1494
        %v1659 = vmul.f32 %v1656, %v1495
        %v1660 = vmul.f32 %v1656, %v1496
        %v1661 = vmul.f32 %v1656, %v1497
        %v1662 = vmul.f32 %v1656, %v1498
        %v1663 = vmul.f32 %v1656, %v1499
        %v1664 = vmul.f32 %v1656, %v1500
        %v1665 = vmul.f32 %v1656, %v1501
        %v1666 = vmul.f32 %v1656, %v1502
        %v1667 = vmul.f32 %v1656, %v1503
        %v1668 = vmul.f32 %v1656, %v1504
        %v1669 = vmul.f32 %v1656, %v1505
        %v1670 = vmul.f32 %v1656, %v1506
        %v1671 = vmul.f32 %v1656, %v1507
        %v1672 = vmul.f32 %v1656, %v1508
        %v1673 = vmul.f32 %v1656, %v1509
        %v1674 = vmul.f32 %v1656, %v1510
        %v1675 = vmul.f32 %v1656, %v1511
        %v1676 = vmul.f32 %v1656, %v1512
        %v1677 = vmul.f32 %v1656, %v1513
        %v1678 = vmul.f32 %v1656, %v1514
        %v1679 = vmul.f32 %v1656, %v1515
        %v1680 = vmul.f32 %v1656, %v1516
        %v1681 = vmul.f32 %v1656, %v1517
        %v1682 = vmul.f32 %v1656, %v1518
        %v1683 = vmul.f32 %v1656, %v1519
        %v1684 = vmul.f32 %v1656, %v1520
        %v1685 = vmul.f32 %v1656, %v1521
        %v1686 = vmul.f32 %v1656, %v1522
        %v1687 = vmul.f32 %v1656, %v1523
        %v1688 = vmul.f32 %v1656, %v1524
        %v1689 = vmul.f32 %v1656, %v1525
        %v1690 = vmul.f32 %v1656, %v1526
        %v1691 = vmul.f32 %v1656, %v1527
        %v1692 = vmul.f32 %v1656, %v1528
        %v1693 = vmul.f32 %v1656, %v1529
        %v1694 = vmul.f32 %v1656, %v1530
        %v1695 = vmul.f32 %v1656, %v1531
        %v1696 = vmul.f32 %v1656, %v1532
        %v1697 = vmul.f32 %v1656, %v1533
        %v1698 = vmul.f32 %v1656, %v1534
        %v1699 = vmul.f32 %v1656, %v1535
        %v1700 = vmul.f32 %v1656, %v1536
        %v1701 = vmul.f32 %v1656, %v1537
        %v1702 = vmul.f32 %v1656, %v1538
        %v1703 = vmul.f32 %v1656, %v1539
        %v1704 = vmul.f32 %v1656, %v1540
        %v1705 = vmul.f32 %v1656, %v1541
        %v1706 = vmul.f32 %v1656, %v1542
        %v1707 = vmul.f32 %v1656, %v1543
        %v1708 = vmul.f32 %v1656, %v1544
        %v1709 = vmul.f32 %v1656, %v1545
        %v1710 = vmul.f32 %v1656, %v1546
        %v1711 = vmul.f32 %v1656, %v1547
        %v1712 = vmul.f32 %v1656, %v1548
        %v1713 = vmul.f32 %v1656, %v1549
        %v1714 = vmul.f32 %v1656, %v1550
        %v1715 = vmul.f32 %v1656, %v1551
        %v1716 = vmul.f32 %v1656, %v1552
        %v1717 = vmul.f32 %v1656, %v1553
        %v1718 = vmul.f32 %v1656, %v1554
        %v1719 = vmul.f32 %v1656, %v1555
        %v1720 = vmul.f32 %v1656, %v1556
        %v1721 = vmul.f32 %v1493, %v1657
        %v1722 = vmul.f32 %v1494, %v1658
        %v1723 = vmul.f32 %v1495, %v1659
        %v1724 = vmul.f32 %v1496, %v1660
        %v1725 = vmul.f32 %v1497, %v1661
        %v1726 = vmul.f32 %v1498, %v1662
        %v1727 = vmul.f32 %v1499, %v1663
        %v1728 = vmul.f32 %v1500, %v1664
        %v1729 = vmul.f32 %v1501, %v1665
        %v1730 = vmul.f32 %v1502, %v1666
        %v1731 = vmul.f32 %v1503, %v1667
        %v1732 = vmul.f32 %v1504, %v1668
        %v1733 = vmul.f32 %v1505, %v1669
        %v1734 = vmul.f32 %v1506, %v1670
        %v1735 = vmul.f32 %v1507, %v1671
        %v1736 = vmul.f32 %v1508, %v1672
        %v1737 = vmul.f32 %v1509, %v1673
        %v1738 = vmul.f32 %v1510, %v1674
        %v1739 = vmul.f32 %v1511, %v1675
        %v1740 = vmul.f32 %v1512, %v1676
        %v1741 = vmul.f32 %v1513, %v1677
        %v1742 = vmul.f32 %v1514, %v1678
        %v1743 = vmul.f32 %v1515, %v1679
        %v1744 = vmul.f32 %v1516, %v1680
        %v1745 = vmul.f32 %v1517, %v1681
        %v1746 = vmul.f32 %v1518, %v1682
        %v1747 = vmul.f32 %v1519, %v1683
        %v1748 = vmul.f32 %v1520, %v1684
        %v1749 = vmul.f32 %v1521, %v1685
        %v1750 = vmul.f32 %v1522, %v1686
        %v1751 = vmul.f32 %v1523, %v1687
        %v1752 = vmul.f32 %v1524, %v1688
        %v1753 = vmul.f32 %v1525, %v1689
        %v1754 = vmul.f32 %v1526, %v1690
        %v1755 = vmul.f32 %v1527, %v1691
        %v1756 = vmul.f32 %v1528, %v1692
        %v1757 = vmul.f32 %v1529, %v1693
        %v1758 = vmul.f32 %v1530, %v1694
        %v1759 = vmul.f32 %v1531, %v1695
        %v1760 = vmul.f32 %v1532, %v1696
        %v1761 = vmul.f32 %v1533, %v1697
        %v1762 = vmul.f32 %v1534, %v1698
        %v1763 = vmul.f32 %v1535, %v1699
        %v1764 = vmul.f32 %v1536, %v1700
        %v1765 = vmul.f32 %v1537, %v1701
        %v1766 = vmul.f32 %v1538, %v1702
        %v1767 = vmul.f32 %v1539, %v1703
        %v1768 = vmul.f32 %v1540, %v1704
        %v1769 = vmul.f32 %v1541, %v1705
        %v1770 = vmul.f32 %v1542, %v1706
        %v1771 = vmul.f32 %v1543, %v1707
        %v1772 = vmul.f32 %v1544, %v1708
        %v1773 = vmul.f32 %v1545, %v1709
        %v1774 = vmul.f32 %v1546, %v1710
        %v1775 = vmul.f32 %v1547, %v1711
        %v1776 = vmul.f32 %v1548, %v1712
        %v1777 = vmul.f32 %v1549, %v1713
        %v1778 = vmul.f32 %v1550, %v1714
        %v1779 = vmul.f32 %v1551, %v1715
        %v1780 = vmul.f32 %v1552, %v1716
        %v1781 = vmul.f32 %v1553, %v1717
        %v1782 = vmul.f32 %v1554, %v1718
        %v1783 = vmul.f32 %v1555, %v1719
        %v1784 = vmul.f32 %v1556, %v1720
        %v1785 = vadd.f32 %v1591, %v1721
        %v1786 = vadd.f32 %v1592, %v1722
        %v1787 = vadd.f32 %v1593, %v1723
        %v1788 = vadd.f32 %v1594, %v1724
        %v1789 = vadd.f32 %v1595, %v1725
        %v1790 = vadd.f32 %v1596, %v1726
        %v1791 = vadd.f32 %v1597, %v1727
        %v1792 = vadd.f32 %v1598, %v1728
        %v1793 = vadd.f32 %v1599, %v1729
        %v1794 = vadd.f32 %v1600, %v1730
        %v1795 = vadd.f32 %v1601, %v1731
        %v1796 = vadd.f32 %v1602, %v1732
        %v1797 = vadd.f32 %v1603, %v1733
        %v1798 = vadd.f32 %v1604, %v1734
        %v1799 = vadd.f32 %v1605, %v1735
        %v1800 = vadd.f32 %v1606, %v1736
        %v1801 = vadd.f32 %v1607, %v1737
        %v1802 = vadd.f32 %v1608, %v1738
        %v1803 = vadd.f32 %v1609, %v1739
        %v1804 = vadd.f32 %v1610, %v1740
        %v1805 = vadd.f32 %v1611, %v1741
        %v1806 = vadd.f32 %v1612, %v1742
        %v1807 = vadd.f32 %v1613, %v1743
        %v1808 = vadd.f32 %v1614, %v1744
        %v1809 = vadd.f32 %v1615, %v1745
        %v1810 = vadd.f32 %v1616, %v1746
        %v1811 = vadd.f32 %v1617, %v1747
        %v1812 = vadd.f32 %v1618, %v1748
        %v1813 = vadd.f32 %v1619, %v1749
        %v1814 = vadd.f32 %v1620, %v1750
        %v1815 = vadd.f32 %v1621, %v1751
        %v1816 = vadd.f32 %v1622, %v1752
        %v1817 = vadd.f32 %v1623, %v1753
        %v1818 = vadd.f32 %v1624, %v1754
        %v1819 = vadd.f32 %v1625, %v1755
        %v1820 = vadd.f32 %v1626, %v1756
        %v1821 = vadd.f32 %v1627, %v1757
        %v1822 = vadd.f32 %v1628, %v1758
        %v1823 = vadd.f32 %v1629, %v1759
        %v1824 = vadd.f32 %v1630, %v1760
        %v1825 = vadd.f32 %v1631, %v1761
        %v1826 = vadd.f32 %v1632, %v1762
        %v1827 = vadd.f32 %v1633, %v1763
        %v1828 = vadd.f32 %v1634, %v1764
        %v1829 = vadd.f32 %v1635, %v1765
        %v1830 = vadd.f32 %v1636, %v1766
        %v1831 = vadd.f32 %v1637, %v1767
        %v1832 = vadd.f32 %v1638, %v1768
        %v1833 = vadd.f32 %v1639, %v1769
        %v1834 = vadd.f32 %v1640, %v1770
        %v1835 = vadd.f32 %v1641, %v1771
        %v1836 = vadd.f32 %v1642, %v1772
        %v1837 = vadd.f32 %v1643, %v1773
        %v1838 = vadd.f32 %v1644, %v1774
        %v1839 = vadd.f32 %v1645, %v1775
        %v1840 = vadd.f32 %v1646, %v1776
        %v1841 = vadd.f32 %v1647, %v1777
        %v1842 = vadd.f32 %v1648, %v1778
        %v1843 = vadd.f32 %v1649, %v1779
        %v1844 = vadd.f32 %v1650, %v1780
        %v1845 = vadd.f32 %v1651, %v1781
        %v1846 = vadd.f32 %v1652, %v1782
        %v1847 = vadd.f32 %v1653, %v1783
        %v1848 = vadd.f32 %v1654, %v1784
        %1849 = vmatprep.subr.mxu0 %v1816
        %1850 = vmatpush1.xpose.msra.mxu0 %v1815
        %1851 = vmatprep.subr.mxu0 %v1814
        %1852 = vmatpush1.xpose.msra.mxu0 %v1813
        %1853 = vmatprep.subr.mxu0 %v1812
        %1854 = vmatpush1.xpose.msra.mxu0 %v1811
        %1855 = vmatprep.subr.mxu0 %v1810
        %1856 = vmatpush1.xpose.msra.mxu0 %v1809
        %1857 = vmatprep.subr.mxu0 %v1808
        %1858 = vmatpush1.xpose.msra.mxu0 %v1807
        %1859 = vmatprep.subr.mxu0 %v1806
        %1860 = vmatpush1.xpose.msra.mxu0 %v1805
        %1861 = vmatprep.subr.mxu0 %v1804
        %1862 = vmatpush1.xpose.msra.mxu0 %v1803
        %1863 = vmatprep.subr.mxu0 %v1802
        %1864 = vmatpush1.xpose.msra.mxu0 %v1801
        %1865 = vmatprep.subr.mxu0 %v1800
        %1866 = vmatpush1.xpose.msra.mxu0 %v1799
        %1867 = vmatprep.subr.mxu0 %v1798
        %1868 = vmatpush1.xpose.msra.mxu0 %v1797
        %1869 = vmatprep.subr.mxu0 %v1796
        %1870 = vmatpush1.xpose.msra.mxu0 %v1795
        %1871 = vmatprep.subr.mxu0 %v1794
        %1872 = vmatpush1.xpose.msra.mxu0 %v1793
        %1873 = vmatprep.subr.mxu0 %v1792
        %1874 = vmatpush1.xpose.msra.mxu0 %v1791
        %1875 = vmatprep.subr.mxu0 %v1790
        %1876 = vmatpush1.xpose.msra.mxu0 %v1789
        %1877 = vmatprep.subr.mxu0 %v1788
        %1878 = vmatpush1.xpose.msra.mxu0 %v1787
        %1879 = vmatprep.subr.mxu0 %v1786
        %1880 = vmatpush1.xpose.msra.mxu0 %v1785
        %1881 = vmatprep.subr.mxu0 %v1848
        %1882 = vmatpush2.xpose.msra.mxu0 %v1847
        %1883 = vmatprep.subr.mxu0 %v1846
        %1884 = vmatpush2.xpose.msra.mxu0 %v1845
        %1885 = vmatprep.subr.mxu0 %v1844
        %1886 = vmatpush2.xpose.msra.mxu0 %v1843
        %1887 = vmatprep.subr.mxu0 %v1842
        %1888 = vmatpush2.xpose.msra.mxu0 %v1841
        %1889 = vmatprep.subr.mxu0 %v1840
        %1890 = vmatpush2.xpose.msra.mxu0 %v1839
        %1891 = vmatprep.subr.mxu0 %v1838
        %1892 = vmatpush2.xpose.msra.mxu0 %v1837
        %1893 = vmatprep.subr.mxu0 %v1836
        %1894 = vmatpush2.xpose.msra.mxu0 %v1835
        %1895 = vmatprep.subr.mxu0 %v1834
        %1896 = vmatpush2.xpose.msra.mxu0 %v1833
        %1897 = vmatprep.subr.mxu0 %v1832
        %1898 = vmatpush2.xpose.msra.mxu0 %v1831
        %1899 = vmatprep.subr.mxu0 %v1830
        %1900 = vmatpush2.xpose.msra.mxu0 %v1829
        %1901 = vmatprep.subr.mxu0 %v1828
        %1902 = vmatpush2.xpose.msra.mxu0 %v1827
        %1903 = vmatprep.subr.mxu0 %v1826
        %1904 = vmatpush2.xpose.msra.mxu0 %v1825
        %1905 = vmatprep.subr.mxu0 %v1824
        %1906 = vmatpush2.xpose.msra.mxu0 %v1823
        %1907 = vmatprep.subr.mxu0 %v1822
        %1908 = vmatpush2.xpose.msra.mxu0 %v1821
        %1909 = vmatprep.subr.mxu0 %v1820
        %1910 = vmatpush2.xpose.msra.mxu0 %v1819
        %1911 = vmatprep.subr.mxu0 %v1818
        %1912 = vmatpush2.xpose.msra.mxu0 %v1817
        %1913 = vmatprep.mubr.f32.mxu0 %v544
        %1914 = vmatmul.mubr.f32.gmra.mxu0 %v542
        %v1915 = vpop.f32.mrf.mxu0
        %v1916 = vadd.f32 %v370, %v1915
        %v1917 = vpop.f32.mrf.mxu0
        %v1918 = vadd.f32 %v371, %v1917
        %1919 = vmatprep.mubr.f32.mxu0 %v550
        %1920 = vmatmul.mubr.f32.gmra.mxu0 %v548
        %v1921 = vpop.f32.mrf.mxu0
        %v1922 = vadd.f32 %v372, %v1921
        %v1923 = vpop.f32.mrf.mxu0
        %v1924 = vadd.f32 %v373, %v1923
        %1925 = vmatprep.mubr.f32.mxu0 %v556
        %1926 = vmatmul.mubr.f32.gmra.mxu0 %v554
        %v1927 = vpop.f32.mrf.mxu0
        %v1928 = vadd.f32 %v374, %v1927
        %v1929 = vpop.f32.mrf.mxu0
        %v1930 = vadd.f32 %v375, %v1929
        %1931 = vmatprep.mubr.f32.mxu0 %v562
        %1932 = vmatmul.mubr.f32.gmra.mxu0 %v560
        %v1933 = vpop.f32.mrf.mxu0
        %v1934 = vadd.f32 %v376, %v1933
        %v1935 = vpop.f32.mrf.mxu0
        %v1936 = vadd.f32 %v377, %v1935
        %1937 = vdwg.mxu0
        %1938 = vst [vmem:[%s231] sm:$0xff] %v1916
        %1939 = vst [vmem:[%s231 + $0x8] sm:$0xff] %v1918
        %1940 = vst [vmem:[%s231 + $0x10] sm:$0xff] %v1922
        %1941 = vst [vmem:[%s231 + $0x18] sm:$0xff] %v1924
        %1942 = vst [vmem:[%s231 + $0x20] sm:$0xff] %v1928
        %1943 = vst [vmem:[%s231 + $0x28] sm:$0xff] %v1930
        %1944 = vst [vmem:[%s231 + $0x30] sm:$0xff] %v1934
        %1945 = vst [vmem:[%s231 + $0x38] sm:$0xff] %v1936
        %s1946 = sand.u32 %s138, 1
        %s1947 = scalar_lea.sflag [#allocation3], %s1946
        %s1948 = sand.u32 %s138, 1
        %s1949 = smul.addr %s1948, 64
        %s1950 = scalar_lea.vmem [#allocation5], %s1949
        // Predicated region
        $region45: #{tpu_custom_call.1} parent=39 // pred_check
          %p1951 = pneg %p148
        $region46: #{tpu_custom_call.1} parent=39 // pred_check_branch
          %1953 = sbr.rel (%p1951) target = $region48
        $region47: #{tpu_custom_call.1} parent=39 // pred_region
          %s1955 = ssub.s32 1024, 1024
          %1956 = vsyncadd %s1947, %s1955
          %s1957 = smul.addr %s20, 8
          %s1958 = smul.addr %s1957, 128
          %s1959 = scalar_lea.hbm %s5, %s1958
          %s1960 = sshll.u32 %s1950, 4
          %s1961 = int_to_ptr.vmem [resolvable:$true] %s1960
          %1966 = dma.vmem_to_hbm [thread:$0]  %s1961, 1024, %s1959, %s1947, 256, 256, 16
        $region48: #{tpu_custom_call.1} parent=39 // pred_fallthru
          _
      $region40: #{tpu_custom_call.1} parent=5 // pred_fallthru
        _
      %p1967 = scmp.le.s32.totalorder 2, %s15
      // Predicated region
      $region49: #{tpu_custom_call.1} parent=5 // pred_check
        %p1968 = pneg %p1967
      $region50: #{tpu_custom_call.1} parent=5 // pred_check_branch
        %1970 = sbr.rel (%p1968) target = $region52
      $region51: #{tpu_custom_call.1} parent=5 // pred_region
        %s1971 = ssub.s32 %s15, 2
        // Predicated region
        $region53: #{tpu_custom_call.1} parent=51 // pred_check
          %p1972 = pneg %p154
        $region54: #{tpu_custom_call.1} parent=51 // pred_check_branch
          %1974 = sbr.rel (%p1972) target = $region56
        $region55: #{tpu_custom_call.1} parent=51 // pred_region
          %s1975 = sand.u32 %s139, 1
          %s1976 = scalar_lea.sflag [#allocation3], %s1975
          %s1977 = sand.u32 %s139, 1
          %s1978 = smul.addr %s1977, 64
          %s1979 = scalar_lea.vmem [#allocation5], %s1978
          %1980 = dma.done %s1976, 1024
        $region56: #{tpu_custom_call.1} parent=51 // pred_fallthru
          _
      $region52: #{tpu_custom_call.1} parent=5 // pred_fallthru
        _
    $region6: #{tpu_custom_call.1} parent=1 // loop_footer
      %s19 = sadd.s32 1, %s15
    $region7: #{tpu_custom_call.1} parent=1 // loop_footer_branch
      %14 = sbr.rel target = $region3
    $region8: #{tpu_custom_call.1} parent=1 // loop_exit
      _
    %1981 = vsyncpa [#allocation3], 1
    %s1982 = scalar_lea.sflag [#allocation3], 1
    %1983 = vsyncpa %s1982, 1
    %1984 = vsyncpa [#allocation4], 1
    %s1985 = scalar_lea.sflag [#allocation4], 1
    %1986 = vsyncpa %s1985, 1

</llo_original>
